<compile_context>
chip_gen: v7x
topology: tpu7x:2x2x1
jax: 0.10.0
libtpu: 0.0.40
codegen_flags: <defaults>
</compile_context>

<pallas_src>
import functools
import math

import jax
import jax.numpy as jnp
from jax import lax
from jax.experimental import pallas as pl
from jax.experimental.pallas import tpu as pltpu

DIMENSION = 2   # state-space dimension of the overdamped particle
EPS = 0.1       # stand-in for args.eps (deterministic constant)

# ----------------------------------------------------------------------------
# Parameter table.  Weights keep the torch orientation (out_features,
# in_features), biases are (out_features,).  Everything is flattened into one
# f32 vector (row-major, in this order) that is scalar-prefetched into SMEM.
# ----------------------------------------------------------------------------
PARAM_SPECS = [
    ("x_input_w", (3, DIMENSION)),  ("x_input_b", (3,)),
    ("x_prop1_w", (3, 3)),          ("x_prop1_b", (3,)),
    ("x_prop2_w", (3, 3)),          ("x_prop2_b", (3,)),
    ("x_lat1_w", (3, DIMENSION)),   ("x_lat1_b", (3,)),
    ("x_lat2_w", (3, 3)),           ("x_lat2_b", (3,)),
    ("x_lat3_w", (3, 3)),           ("x_lat3_b", (3,)),
    ("x_lat_out_w", (1, 3)),        ("x_lat_out_b", (1,)),
    ("cp1_w", (3, 3)),              # PositiveLinear, no bias
    ("cp2_w", (3, 3)),
    ("cp_out_w", (1, 3)),
    ("cp1_mid_w", (3, 3)),          ("cp1_mid_b", (3,)),
    ("cp2_mid_w", (3, 3)),          ("cp2_mid_b", (3,)),
    ("cp_out_mid_w", (3, 3)),       ("cp_out_mid_b", (3,)),
    ("cl_in_w", (3, DIMENSION)),    # no bias
    ("cl1_w", (3, DIMENSION)),
    ("cl2_w", (3, DIMENSION)),
    ("cl_out_w", (1, DIMENSION)),
    ("cl_in_mid_w", (DIMENSION, DIMENSION)), ("cl_in_mid_b", (DIMENSION,)),
    ("cl1_mid_w", (DIMENSION, 3)),           ("cl1_mid_b", (DIMENSION,)),
    ("cl2_mid_w", (DIMENSION, 3)),           ("cl2_mid_b", (DIMENSION,)),
    ("cl_out_mid_w", (DIMENSION, 3)),        ("cl_out_mid_b", (DIMENSION,)),
]

PARAM_OFFSETS = {}
_off = 0
for _name, _shape in PARAM_SPECS:
    PARAM_OFFSETS[_name] = (_off, _shape)
    _off += int(math.prod(_shape))
TOTAL_PARAMS = _off


def _positive_w(w):
    # PositiveLinear reparametrization: W>=0 -> W + exp(-eps); else exp(W - eps)
    return jnp.where(w >= 0.0, w + jnp.exp(-jnp.float32(EPS)),
                     jnp.exp(w - jnp.float32(EPS)))


def _softplus_host(x):
    # Stable softplus, identical to the in-kernel form (matches torch in f32).
    return jnp.maximum(x, 0.0) + jnp.log1p(jnp.exp(-jnp.abs(x)))


# ----------------------------------------------------------------------------
# Kernel
# ----------------------------------------------------------------------------
def dissipation_kernel(lane_block, chunk, p_ref, x0_ref, x0s_ref, out_ref):
    """p_ref: (TOTAL_PARAMS,) f32 in SMEM (scalar-prefetched).
       x0_ref, x0s_ref: (DIMENSION, 8, lane_block) f32 in VMEM (batch folded).
       out_ref: (8, lane_block) f32 in VMEM (lane-dense output slab)."""

    # --- Hoist every SMEM scalar parameter read above the lane-chunk loop ---
    # (read once per grid step; reused by every chunk below).
    W = {}
    for name, (off, shape) in PARAM_OFFSETS.items():
        n = int(math.prod(shape))
        W[name] = [p_ref[off + k] for k in range(n)]

    def linear(x_rows, w_name, b_name=None):
        # y[o] = sum_i W[o, i] * x[i]  (+ b[o]) — scalar-weight FMAs on the VPU.
        _, (out_d, in_d) = PARAM_OFFSETS[w_name]
        assert in_d == len(x_rows)
        w = W[w_name]
        outs = []
        for o in range(out_d):
            acc = w[o * in_d + 0] * x_rows[0]
            for i in range(1, in_d):
                acc = acc + w[o * in_d + i] * x_rows[i]
            if b_name is not None:
                acc = acc + W[b_name][o]
            outs.append(acc)
        return outs

    def softplus(rows):
        return [jnp.maximum(r, 0.0) + jnp.log1p(jnp.exp(-jnp.abs(r)))
                for r in rows]

    def mul(a_rows, b_rows):
        return [a * b for a, b in zip(a_rows, b_rows)]

    def add(*row_lists):
        acc = list(row_lists[0])
        for rows in row_lists[1:]:
            acc = [a + b for a, b in zip(acc, rows)]
        return acc

    def compute_chunk(start):
        # Each "row" is an (8, chunk) f32 slab; activations are lists of rows.
        x0 = [x0_ref[i, :, pl.ds(start, chunk)] for i in range(DIMENSION)]
        x0_star = [x0s_ref[i, :, pl.ds(start, chunk)] for i in range(DIMENSION)]

        # layer "in"
        x_star = softplus(add(
            linear(x0, "x_lat1_w", "x_lat1_b"),
            linear(mul(x0_star, linear(x0, "cl_in_mid_w", "cl_in_mid_b")),
                   "cl_in_w"),
        ))
        x = softplus(linear(x0, "x_input_w", "x_input_b"))

        # layer 1  (cp*_w are already reparametrized positive in the wrapper)
        x_star = softplus(add(
            linear(x, "x_lat2_w", "x_lat2_b"),
            linear(mul(x_star, softplus(linear(x, "cp1_mid_w", "cp1_mid_b"))),
                   "cp1_w"),
            linear(mul(x0_star, linear(x, "cl1_mid_w", "cl1_mid_b")), "cl1_w"),
        ))
        x = softplus(linear(x, "x_prop1_w", "x_prop1_b"))

        # layer 2
        x_star = softplus(add(
            linear(x, "x_lat3_w", "x_lat3_b"),
            linear(mul(x_star, softplus(linear(x, "cp2_mid_w", "cp2_mid_b"))),
                   "cp2_w"),
            linear(mul(x0_star, linear(x, "cl2_mid_w", "cl2_mid_b")), "cl2_w"),
        ))
        x = softplus(linear(x, "x_prop2_w", "x_prop2_b"))

        # output layer
        out = softplus(add(
            linear(x, "x_lat_out_w", "x_lat_out_b"),
            linear(mul(x_star, softplus(linear(x, "cp_out_mid_w", "cp_out_mid_b"))),
                   "cp_out_w"),
            linear(mul(x0_star, linear(x, "cl_out_mid_w", "cl_out_mid_b")),
                   "cl_out_w"),
        ))
        out_ref[:, pl.ds(start, chunk)] = out[0].astype(out_ref.dtype)

    # Decouple compute tile from DMA tile: walk the large BlockSpec block in
    # `chunk`-lane sub-chunks so the live vreg set stays small (no spills).
    n_chunks = lane_block // chunk
    if n_chunks == 1:
        compute_chunk(0)
    else:
        def body(j, carry):
            compute_chunk(pl.multiple_of(j * chunk, chunk))
            return carry
        lax.fori_loop(0, n_chunks, body, 0)


# ----------------------------------------------------------------------------
# Wrapper
# ----------------------------------------------------------------------------
def _round_up(x, m):
    return ((x + m - 1) // m) * m


def _choose_lane_block(batch):
    """Adaptive DMA block: big enough to amortize per-step overhead, clamped to
    the batch (no giant padded tails), and small enough to give >=2 grid steps
    when the batch allows it (so v7x can shard across both TensorCores)."""
    lanes_needed = -(-batch // 8)                      # ceil(batch / 8)
    lanes_rounded = _round_up(max(lanes_needed, 1), 128)
    lane_block = min(2048, lanes_rounded)
    if lanes_rounded >= 256:                           # enough work for 2 steps
        half = max(128, (lanes_rounded // 2 // 128) * 128)
        lane_block = min(lane_block, half)
    return lane_block


@functools.partial(jax.jit, static_argnames=("lane_block",))
def dissipation_forward(inp, inp_star, params, lane_block=None):
    """inp, inp_star: (B, DIMENSION) float32.  Returns (B, 1) float32."""
    B = inp.shape[0]
    assert inp.shape == (B, DIMENSION) and inp_star.shape == (B, DIMENSION)

    if lane_block is None:
        lane_block = _choose_lane_block(B)
    assert lane_block % 128 == 0
    chunk = 256 if lane_block % 256 == 0 else 128      # in-kernel compute tile

    # Hoist the PositiveLinear reparametrization out of the kernel (one-time
    # 3x3 transform as a plain XLA op).
    p = dict(params)
    for name in ("cp1_w", "cp2_w", "cp_out_w"):
        p[name] = _positive_w(p[name])

    flat_params = jnp.concatenate(
        [p[name].reshape(-1).astype(jnp.float32) for name, _ in PARAM_SPECS])

    # Fold batch onto (sublane=8, lane) so every feature row is a dense slab.
    tile = 8 * lane_block
    b_pad = _round_up(B, tile)
    lanes = b_pad // 8

    # TODO(synk): fold() is an extra XLA relayout over the inputs; callers that
    # can produce feature-major (DIMENSION, 8, lanes) data directly should skip it.
    def fold(a):  # (B, F) -> (F, 8, lanes)
        a = jnp.pad(a.astype(jnp.float32), ((0, b_pad - B), (0, 0)))
        return a.T.reshape(DIMENSION, 8, lanes)

    x0_f = fold(inp)
    x0s_f = fold(inp_star)

    kernel = functools.partial(dissipation_kernel, lane_block, chunk)
    grid = (lanes // lane_block,)

    out2d = pl.pallas_call(
        kernel,
        out_shape=jax.ShapeDtypeStruct((8, lanes), jnp.float32),
        grid_spec=pltpu.PrefetchScalarGridSpec(
            # Params land in SMEM once, before the grid runs.
            num_scalar_prefetch=1,
            grid=grid,
            in_specs=[
                pl.BlockSpec((DIMENSION, 8, lane_block),
                             lambda i, p_smem: (0, 0, i)),
                pl.BlockSpec((DIMENSION, 8, lane_block),
                             lambda i, p_smem: (0, 0, i)),
            ],
            # lane-dense output slab (no masked (B,1) partial stores)
            out_specs=pl.BlockSpec((8, lane_block), lambda i, p_smem: (0, i)),
        ),
        compiler_params=pltpu.CompilerParams(
            dimension_semantics=("parallel",),   # shard batch grid across TCs
        ),
    )(flat_params, x0_f, x0s_f)

    return out2d.reshape(b_pad)[:B][:, None]


# ----------------------------------------------------------------------------
# Pure-JAX reference (batch-major) for correctness checking.
# ----------------------------------------------------------------------------
def _reference_forward(inp, inp_star, params):
    def lin(x, wn, bn=None):
        y = x @ params[wn].T
        if bn is not None:
            y = y + params[bn]
        return y

    def plin(x, wn):
        return x @ _positive_w(params[wn]).T

    sp = _softplus_host
    x0, x0s = inp, inp_star
    x_star = sp(lin(x0, "x_lat1_w", "x_lat1_b")
                + lin(x0s * lin(x0, "cl_in_mid_w", "cl_in_mid_b"), "cl_in_w"))
    x = sp(lin(x0, "x_input_w", "x_input_b"))
    x_star = sp(lin(x, "x_lat2_w", "x_lat2_b")
                + plin(x_star * sp(lin(x, "cp1_mid_w", "cp1_mid_b")), "cp1_w")
                + lin(x0s * lin(x, "cl1_mid_w", "cl1_mid_b"), "cl1_w"))
    x = sp(lin(x, "x_prop1_w", "x_prop1_b"))
    x_star = sp(lin(x, "x_lat3_w", "x_lat3_b")
                + plin(x_star * sp(lin(x, "cp2_mid_w", "cp2_mid_b")), "cp2_w")
                + lin(x0s * lin(x, "cl2_mid_w", "cl2_mid_b"), "cl2_w"))
    x = sp(lin(x, "x_prop2_w", "x_prop2_b"))
    out = sp(lin(x, "x_lat_out_w", "x_lat_out_b")
             + plin(x_star * sp(lin(x, "cp_out_mid_w", "cp_out_mid_b")), "cp_out_w")
             + lin(x0s * lin(x, "cl_out_mid_w", "cl_out_mid_b"), "cl_out_w"))
    return out


def init_params(key):
    """Deterministic kaiming-normal weights (fan_in mode, gain=sqrt(2)), zero biases."""
    params = {}
    for name, shape in PARAM_SPECS:
        if name.endswith("_b"):
            params[name] = jnp.zeros(shape, jnp.float32)
        else:
            fan_in = shape[1]  # weight stored torch-style as (out, in)
            key, sub = jax.random.split(key)
            std = (2.0 / fan_in) ** 0.5
            params[name] = std * jax.random.normal(sub, shape, jnp.float32)
    return params


if __name__ == "__main__":
    key = jax.random.PRNGKey(0)
    k_p, k_x, k_xs = jax.random.split(key, 3)
    params = init_params(k_p)

    # Small batch: exercises padding + the adaptive single-step/single-chunk path.
    B = 200
    x = jax.random.normal(k_x, (B, DIMENSION), jnp.float32)
    x_star = jax.random.normal(k_xs, (B, DIMENSION), jnp.float32)
    out = dissipation_forward(x, x_star, params)
    jax.block_until_ready(out)
    assert out.shape == (B, 1)
    assert bool(jnp.all(jnp.isfinite(out)))
    ref = _reference_forward(x, x_star, params)
    assert jnp.allclose(out, ref, rtol=1e-4, atol=1e-4), \
        float(jnp.max(jnp.abs(out - ref)))

    # Larger batch: exercises the multi-step grid + in-kernel lane-chunk loop.
    B_big = 40000
    kb_x, kb_xs = jax.random.split(jax.random.PRNGKey(1))
    xb = jax.random.normal(kb_x, (B_big, DIMENSION), jnp.float32)
    xb_star = jax.random.normal(kb_xs, (B_big, DIMENSION), jnp.float32)
    out_b = dissipation_forward(xb, xb_star, params)
    jax.block_until_ready(out_b)
    assert out_b.shape == (B_big, 1)
    assert bool(jnp.all(jnp.isfinite(out_b)))
    ref_b = _reference_forward(xb, xb_star, params)
    assert jnp.allclose(out_b, ref_b, rtol=1e-4, atol=1e-4), \
        float(jnp.max(jnp.abs(out_b - ref_b)))

    print("KERNEL_OK")
</pallas_src>

<mosaic_0001>
module attributes {stable_mosaic.version = 11 : i64} {
  func.func @dissipation_kernel(%arg0: i32, %arg1: memref<177xf32, #tpu.memory_space<smem>>, %arg2: memref<2x8x128xf32, #tpu.memory_space<vmem>>, %arg3: memref<2x8x128xf32, #tpu.memory_space<vmem>>, %arg4: memref<8x128xf32, #tpu.memory_space<vmem>>) attributes {dimension_semantics = [#tpu.dimension_semantics<parallel>], iteration_bounds = array<i64: 1>, scalar_prefetch = 1 : i64, scratch_operands = 0 : i64, tpu.core_type = #tpu.core_type<tc>, window_params = [{transform_indices = @transform_0, window_bounds = array<i64: 2, 8, 128>}, {transform_indices = @transform_1, window_bounds = array<i64: 2, 8, 128>}, {transform_indices = @transform_2, window_bounds = array<i64: 8, 128>}]} {
    %c0 = arith.constant 0 : index
    %0 = memref.load %arg1[%c0] : memref<177xf32, #tpu.memory_space<smem>>
    %c1 = arith.constant 1 : index
    %1 = memref.load %arg1[%c1] : memref<177xf32, #tpu.memory_space<smem>>
    %c2 = arith.constant 2 : index
    %2 = memref.load %arg1[%c2] : memref<177xf32, #tpu.memory_space<smem>>
    %c3 = arith.constant 3 : index
    %3 = memref.load %arg1[%c3] : memref<177xf32, #tpu.memory_space<smem>>
    %c4 = arith.constant 4 : index
    %4 = memref.load %arg1[%c4] : memref<177xf32, #tpu.memory_space<smem>>
    %c5 = arith.constant 5 : index
    %5 = memref.load %arg1[%c5] : memref<177xf32, #tpu.memory_space<smem>>
    %c6 = arith.constant 6 : index
    %6 = memref.load %arg1[%c6] : memref<177xf32, #tpu.memory_space<smem>>
    %c7 = arith.constant 7 : index
    %7 = memref.load %arg1[%c7] : memref<177xf32, #tpu.memory_space<smem>>
    %c8 = arith.constant 8 : index
    %8 = memref.load %arg1[%c8] : memref<177xf32, #tpu.memory_space<smem>>
    %c9 = arith.constant 9 : index
    %9 = memref.load %arg1[%c9] : memref<177xf32, #tpu.memory_space<smem>>
    %c10 = arith.constant 10 : index
    %10 = memref.load %arg1[%c10] : memref<177xf32, #tpu.memory_space<smem>>
    %c11 = arith.constant 11 : index
    %11 = memref.load %arg1[%c11] : memref<177xf32, #tpu.memory_space<smem>>
    %c12 = arith.constant 12 : index
    %12 = memref.load %arg1[%c12] : memref<177xf32, #tpu.memory_space<smem>>
    %c13 = arith.constant 13 : index
    %13 = memref.load %arg1[%c13] : memref<177xf32, #tpu.memory_space<smem>>
    %c14 = arith.constant 14 : index
    %14 = memref.load %arg1[%c14] : memref<177xf32, #tpu.memory_space<smem>>
    %c15 = arith.constant 15 : index
    %15 = memref.load %arg1[%c15] : memref<177xf32, #tpu.memory_space<smem>>
    %c16 = arith.constant 16 : index
    %16 = memref.load %arg1[%c16] : memref<177xf32, #tpu.memory_space<smem>>
    %c17 = arith.constant 17 : index
    %17 = memref.load %arg1[%c17] : memref<177xf32, #tpu.memory_space<smem>>
    %c18 = arith.constant 18 : index
    %18 = memref.load %arg1[%c18] : memref<177xf32, #tpu.memory_space<smem>>
    %c19 = arith.constant 19 : index
    %19 = memref.load %arg1[%c19] : memref<177xf32, #tpu.memory_space<smem>>
    %c20 = arith.constant 20 : index
    %20 = memref.load %arg1[%c20] : memref<177xf32, #tpu.memory_space<smem>>
    %c21 = arith.constant 21 : index
    %21 = memref.load %arg1[%c21] : memref<177xf32, #tpu.memory_space<smem>>
    %c22 = arith.constant 22 : index
    %22 = memref.load %arg1[%c22] : memref<177xf32, #tpu.memory_space<smem>>
    %c23 = arith.constant 23 : index
    %23 = memref.load %arg1[%c23] : memref<177xf32, #tpu.memory_space<smem>>
    %c24 = arith.constant 24 : index
    %24 = memref.load %arg1[%c24] : memref<177xf32, #tpu.memory_space<smem>>
    %c25 = arith.constant 25 : index
    %25 = memref.load %arg1[%c25] : memref<177xf32, #tpu.memory_space<smem>>
    %c26 = arith.constant 26 : index
    %26 = memref.load %arg1[%c26] : memref<177xf32, #tpu.memory_space<smem>>
    %c27 = arith.constant 27 : index
    %27 = memref.load %arg1[%c27] : memref<177xf32, #tpu.memory_space<smem>>
    %c28 = arith.constant 28 : index
    %28 = memref.load %arg1[%c28] : memref<177xf32, #tpu.memory_space<smem>>
    %c29 = arith.constant 29 : index
    %29 = memref.load %arg1[%c29] : memref<177xf32, #tpu.memory_space<smem>>
    %c30 = arith.constant 30 : index
    %30 = memref.load %arg1[%c30] : memref<177xf32, #tpu.memory_space<smem>>
    %c31 = arith.constant 31 : index
    %31 = memref.load %arg1[%c31] : memref<177xf32, #tpu.memory_space<smem>>
    %c32 = arith.constant 32 : index
    %32 = memref.load %arg1[%c32] : memref<177xf32, #tpu.memory_space<smem>>
    %c33 = arith.constant 33 : index
    %33 = memref.load %arg1[%c33] : memref<177xf32, #tpu.memory_space<smem>>
    %c34 = arith.constant 34 : index
    %34 = memref.load %arg1[%c34] : memref<177xf32, #tpu.memory_space<smem>>
    %c35 = arith.constant 35 : index
    %35 = memref.load %arg1[%c35] : memref<177xf32, #tpu.memory_space<smem>>
    %c36 = arith.constant 36 : index
    %36 = memref.load %arg1[%c36] : memref<177xf32, #tpu.memory_space<smem>>
    %c37 = arith.constant 37 : index
    %37 = memref.load %arg1[%c37] : memref<177xf32, #tpu.memory_space<smem>>
    %c38 = arith.constant 38 : index
    %38 = memref.load %arg1[%c38] : memref<177xf32, #tpu.memory_space<smem>>
    %c39 = arith.constant 39 : index
    %39 = memref.load %arg1[%c39] : memref<177xf32, #tpu.memory_space<smem>>
    %c40 = arith.constant 40 : index
    %40 = memref.load %arg1[%c40] : memref<177xf32, #tpu.memory_space<smem>>
    %c41 = arith.constant 41 : index
    %41 = memref.load %arg1[%c41] : memref<177xf32, #tpu.memory_space<smem>>
    %c42 = arith.constant 42 : index
    %42 = memref.load %arg1[%c42] : memref<177xf32, #tpu.memory_space<smem>>
    %c43 = arith.constant 43 : index
    %43 = memref.load %arg1[%c43] : memref<177xf32, #tpu.memory_space<smem>>
    %c44 = arith.constant 44 : index
    %44 = memref.load %arg1[%c44] : memref<177xf32, #tpu.memory_space<smem>>
    %c45 = arith.constant 45 : index
    %45 = memref.load %arg1[%c45] : memref<177xf32, #tpu.memory_space<smem>>
    %c46 = arith.constant 46 : index
    %46 = memref.load %arg1[%c46] : memref<177xf32, #tpu.memory_space<smem>>
    %c47 = arith.constant 47 : index
    %47 = memref.load %arg1[%c47] : memref<177xf32, #tpu.memory_space<smem>>
    %c48 = arith.constant 48 : index
    %48 = memref.load %arg1[%c48] : memref<177xf32, #tpu.memory_space<smem>>
    %c49 = arith.constant 49 : index
    %49 = memref.load %arg1[%c49] : memref<177xf32, #tpu.memory_space<smem>>
    %c50 = arith.constant 50 : index
    %50 = memref.load %arg1[%c50] : memref<177xf32, #tpu.memory_space<smem>>
    %c51 = arith.constant 51 : index
    %51 = memref.load %arg1[%c51] : memref<177xf32, #tpu.memory_space<smem>>
    %c52 = arith.constant 52 : index
    %52 = memref.load %arg1[%c52] : memref<177xf32, #tpu.memory_space<smem>>
    %c53 = arith.constant 53 : index
    %53 = memref.load %arg1[%c53] : memref<177xf32, #tpu.memory_space<smem>>
    %c54 = arith.constant 54 : index
    %54 = memref.load %arg1[%c54] : memref<177xf32, #tpu.memory_space<smem>>
    %c55 = arith.constant 55 : index
    %55 = memref.load %arg1[%c55] : memref<177xf32, #tpu.memory_space<smem>>
    %c56 = arith.constant 56 : index
    %56 = memref.load %arg1[%c56] : memref<177xf32, #tpu.memory_space<smem>>
    %c57 = arith.constant 57 : index
    %57 = memref.load %arg1[%c57] : memref<177xf32, #tpu.memory_space<smem>>
    %c58 = arith.constant 58 : index
    %58 = memref.load %arg1[%c58] : memref<177xf32, #tpu.memory_space<smem>>
    %c59 = arith.constant 59 : index
    %59 = memref.load %arg1[%c59] : memref<177xf32, #tpu.memory_space<smem>>
    %c60 = arith.constant 60 : index
    %60 = memref.load %arg1[%c60] : memref<177xf32, #tpu.memory_space<smem>>
    %c61 = arith.constant 61 : index
    %61 = memref.load %arg1[%c61] : memref<177xf32, #tpu.memory_space<smem>>
    %c62 = arith.constant 62 : index
    %62 = memref.load %arg1[%c62] : memref<177xf32, #tpu.memory_space<smem>>
    %c63 = arith.constant 63 : index
    %63 = memref.load %arg1[%c63] : memref<177xf32, #tpu.memory_space<smem>>
    %c64 = arith.constant 64 : index
    %64 = memref.load %arg1[%c64] : memref<177xf32, #tpu.memory_space<smem>>
    %c65 = arith.constant 65 : index
    %65 = memref.load %arg1[%c65] : memref<177xf32, #tpu.memory_space<smem>>
    %c66 = arith.constant 66 : index
    %66 = memref.load %arg1[%c66] : memref<177xf32, #tpu.memory_space<smem>>
    %c67 = arith.constant 67 : index
    %67 = memref.load %arg1[%c67] : memref<177xf32, #tpu.memory_space<smem>>
    %c68 = arith.constant 68 : index
    %68 = memref.load %arg1[%c68] : memref<177xf32, #tpu.memory_space<smem>>
    %c69 = arith.constant 69 : index
    %69 = memref.load %arg1[%c69] : memref<177xf32, #tpu.memory_space<smem>>
    %c70 = arith.constant 70 : index
    %70 = memref.load %arg1[%c70] : memref<177xf32, #tpu.memory_space<smem>>
    %c71 = arith.constant 71 : index
    %71 = memref.load %arg1[%c71] : memref<177xf32, #tpu.memory_space<smem>>
    %c72 = arith.constant 72 : index
    %72 = memref.load %arg1[%c72] : memref<177xf32, #tpu.memory_space<smem>>
    %c73 = arith.constant 73 : index
    %73 = memref.load %arg1[%c73] : memref<177xf32, #tpu.memory_space<smem>>
    %c74 = arith.constant 74 : index
    %74 = memref.load %arg1[%c74] : memref<177xf32, #tpu.memory_space<smem>>
    %c75 = arith.constant 75 : index
    %75 = memref.load %arg1[%c75] : memref<177xf32, #tpu.memory_space<smem>>
    %c76 = arith.constant 76 : index
    %76 = memref.load %arg1[%c76] : memref<177xf32, #tpu.memory_space<smem>>
    %c77 = arith.constant 77 : index
    %77 = memref.load %arg1[%c77] : memref<177xf32, #tpu.memory_space<smem>>
    %c78 = arith.constant 78 : index
    %78 = memref.load %arg1[%c78] : memref<177xf32, #tpu.memory_space<smem>>
    %c79 = arith.constant 79 : index
    %79 = memref.load %arg1[%c79] : memref<177xf32, #tpu.memory_space<smem>>
    %c80 = arith.constant 80 : index
    %80 = memref.load %arg1[%c80] : memref<177xf32, #tpu.memory_space<smem>>
    %c81 = arith.constant 81 : index
    %81 = memref.load %arg1[%c81] : memref<177xf32, #tpu.memory_space<smem>>
    %c82 = arith.constant 82 : index
    %82 = memref.load %arg1[%c82] : memref<177xf32, #tpu.memory_space<smem>>
    %c83 = arith.constant 83 : index
    %83 = memref.load %arg1[%c83] : memref<177xf32, #tpu.memory_space<smem>>
    %c84 = arith.constant 84 : index
    %84 = memref.load %arg1[%c84] : memref<177xf32, #tpu.memory_space<smem>>
    %c85 = arith.constant 85 : index
    %85 = memref.load %arg1[%c85] : memref<177xf32, #tpu.memory_space<smem>>
    %c86 = arith.constant 86 : index
    %86 = memref.load %arg1[%c86] : memref<177xf32, #tpu.memory_space<smem>>
    %c87 = arith.constant 87 : index
    %87 = memref.load %arg1[%c87] : memref<177xf32, #tpu.memory_space<smem>>
    %c88 = arith.constant 88 : index
    %88 = memref.load %arg1[%c88] : memref<177xf32, #tpu.memory_space<smem>>
    %c89 = arith.constant 89 : index
    %89 = memref.load %arg1[%c89] : memref<177xf32, #tpu.memory_space<smem>>
    %c90 = arith.constant 90 : index
    %90 = memref.load %arg1[%c90] : memref<177xf32, #tpu.memory_space<smem>>
    %c91 = arith.constant 91 : index
    %91 = memref.load %arg1[%c91] : memref<177xf32, #tpu.memory_space<smem>>
    %c92 = arith.constant 92 : index
    %92 = memref.load %arg1[%c92] : memref<177xf32, #tpu.memory_space<smem>>
    %c93 = arith.constant 93 : index
    %93 = memref.load %arg1[%c93] : memref<177xf32, #tpu.memory_space<smem>>
    %c94 = arith.constant 94 : index
    %94 = memref.load %arg1[%c94] : memref<177xf32, #tpu.memory_space<smem>>
    %c95 = arith.constant 95 : index
    %95 = memref.load %arg1[%c95] : memref<177xf32, #tpu.memory_space<smem>>
    %c96 = arith.constant 96 : index
    %96 = memref.load %arg1[%c96] : memref<177xf32, #tpu.memory_space<smem>>
    %c97 = arith.constant 97 : index
    %97 = memref.load %arg1[%c97] : memref<177xf32, #tpu.memory_space<smem>>
    %c98 = arith.constant 98 : index
    %98 = memref.load %arg1[%c98] : memref<177xf32, #tpu.memory_space<smem>>
    %c99 = arith.constant 99 : index
    %99 = memref.load %arg1[%c99] : memref<177xf32, #tpu.memory_space<smem>>
    %c100 = arith.constant 100 : index
    %100 = memref.load %arg1[%c100] : memref<177xf32, #tpu.memory_space<smem>>
    %c101 = arith.constant 101 : index
    %101 = memref.load %arg1[%c101] : memref<177xf32, #tpu.memory_space<smem>>
    %c102 = arith.constant 102 : index
    %102 = memref.load %arg1[%c102] : memref<177xf32, #tpu.memory_space<smem>>
    %c103 = arith.constant 103 : index
    %103 = memref.load %arg1[%c103] : memref<177xf32, #tpu.memory_space<smem>>
    %c104 = arith.constant 104 : index
    %104 = memref.load %arg1[%c104] : memref<177xf32, #tpu.memory_space<smem>>
    %c105 = arith.constant 105 : index
    %105 = memref.load %arg1[%c105] : memref<177xf32, #tpu.memory_space<smem>>
    %c106 = arith.constant 106 : index
    %106 = memref.load %arg1[%c106] : memref<177xf32, #tpu.memory_space<smem>>
    %c107 = arith.constant 107 : index
    %107 = memref.load %arg1[%c107] : memref<177xf32, #tpu.memory_space<smem>>
    %c108 = arith.constant 108 : index
    %108 = memref.load %arg1[%c108] : memref<177xf32, #tpu.memory_space<smem>>
    %c109 = arith.constant 109 : index
    %109 = memref.load %arg1[%c109] : memref<177xf32, #tpu.memory_space<smem>>
    %c110 = arith.constant 110 : index
    %110 = memref.load %arg1[%c110] : memref<177xf32, #tpu.memory_space<smem>>
    %c111 = arith.constant 111 : index
    %111 = memref.load %arg1[%c111] : memref<177xf32, #tpu.memory_space<smem>>
    %c112 = arith.constant 112 : index
    %112 = memref.load %arg1[%c112] : memref<177xf32, #tpu.memory_space<smem>>
    %c113 = arith.constant 113 : index
    %113 = memref.load %arg1[%c113] : memref<177xf32, #tpu.memory_space<smem>>
    %c114 = arith.constant 114 : index
    %114 = memref.load %arg1[%c114] : memref<177xf32, #tpu.memory_space<smem>>
    %c115 = arith.constant 115 : index
    %115 = memref.load %arg1[%c115] : memref<177xf32, #tpu.memory_space<smem>>
    %c116 = arith.constant 116 : index
    %116 = memref.load %arg1[%c116] : memref<177xf32, #tpu.memory_space<smem>>
    %c117 = arith.constant 117 : index
    %117 = memref.load %arg1[%c117] : memref<177xf32, #tpu.memory_space<smem>>
    %c118 = arith.constant 118 : index
    %118 = memref.load %arg1[%c118] : memref<177xf32, #tpu.memory_space<smem>>
    %c119 = arith.constant 119 : index
    %119 = memref.load %arg1[%c119] : memref<177xf32, #tpu.memory_space<smem>>
    %c120 = arith.constant 120 : index
    %120 = memref.load %arg1[%c120] : memref<177xf32, #tpu.memory_space<smem>>
    %c121 = arith.constant 121 : index
    %121 = memref.load %arg1[%c121] : memref<177xf32, #tpu.memory_space<smem>>
    %c122 = arith.constant 122 : index
    %122 = memref.load %arg1[%c122] : memref<177xf32, #tpu.memory_space<smem>>
    %c123 = arith.constant 123 : index
    %123 = memref.load %arg1[%c123] : memref<177xf32, #tpu.memory_space<smem>>
    %c124 = arith.constant 124 : index
    %124 = memref.load %arg1[%c124] : memref<177xf32, #tpu.memory_space<smem>>
    %c125 = arith.constant 125 : index
    %125 = memref.load %arg1[%c125] : memref<177xf32, #tpu.memory_space<smem>>
    %c126 = arith.constant 126 : index
    %126 = memref.load %arg1[%c126] : memref<177xf32, #tpu.memory_space<smem>>
    %c127 = arith.constant 127 : index
    %127 = memref.load %arg1[%c127] : memref<177xf32, #tpu.memory_space<smem>>
    %c128 = arith.constant 128 : index
    %128 = memref.load %arg1[%c128] : memref<177xf32, #tpu.memory_space<smem>>
    %c129 = arith.constant 129 : index
    %129 = memref.load %arg1[%c129] : memref<177xf32, #tpu.memory_space<smem>>
    %c130 = arith.constant 130 : index
    %130 = memref.load %arg1[%c130] : memref<177xf32, #tpu.memory_space<smem>>
    %c131 = arith.constant 131 : index
    %131 = memref.load %arg1[%c131] : memref<177xf32, #tpu.memory_space<smem>>
    %c132 = arith.constant 132 : index
    %132 = memref.load %arg1[%c132] : memref<177xf32, #tpu.memory_space<smem>>
    %c133 = arith.constant 133 : index
    %133 = memref.load %arg1[%c133] : memref<177xf32, #tpu.memory_space<smem>>
    %c134 = arith.constant 134 : index
    %134 = memref.load %arg1[%c134] : memref<177xf32, #tpu.memory_space<smem>>
    %c135 = arith.constant 135 : index
    %135 = memref.load %arg1[%c135] : memref<177xf32, #tpu.memory_space<smem>>
    %c136 = arith.constant 136 : index
    %136 = memref.load %arg1[%c136] : memref<177xf32, #tpu.memory_space<smem>>
    %c137 = arith.constant 137 : index
    %137 = memref.load %arg1[%c137] : memref<177xf32, #tpu.memory_space<smem>>
    %c138 = arith.constant 138 : index
    %138 = memref.load %arg1[%c138] : memref<177xf32, #tpu.memory_space<smem>>
    %c139 = arith.constant 139 : index
    %139 = memref.load %arg1[%c139] : memref<177xf32, #tpu.memory_space<smem>>
    %c140 = arith.constant 140 : index
    %140 = memref.load %arg1[%c140] : memref<177xf32, #tpu.memory_space<smem>>
    %c141 = arith.constant 141 : index
    %141 = memref.load %arg1[%c141] : memref<177xf32, #tpu.memory_space<smem>>
    %c142 = arith.constant 142 : index
    %142 = memref.load %arg1[%c142] : memref<177xf32, #tpu.memory_space<smem>>
    %c143 = arith.constant 143 : index
    %143 = memref.load %arg1[%c143] : memref<177xf32, #tpu.memory_space<smem>>
    %c144 = arith.constant 144 : index
    %144 = memref.load %arg1[%c144] : memref<177xf32, #tpu.memory_space<smem>>
    %c145 = arith.constant 145 : index
    %145 = memref.load %arg1[%c145] : memref<177xf32, #tpu.memory_space<smem>>
    %c146 = arith.constant 146 : index
    %146 = memref.load %arg1[%c146] : memref<177xf32, #tpu.memory_space<smem>>
    %c147 = arith.constant 147 : index
    %147 = memref.load %arg1[%c147] : memref<177xf32, #tpu.memory_space<smem>>
    %c148 = arith.constant 148 : index
    %148 = memref.load %arg1[%c148] : memref<177xf32, #tpu.memory_space<smem>>
    %c149 = arith.constant 149 : index
    %149 = memref.load %arg1[%c149] : memref<177xf32, #tpu.memory_space<smem>>
    %c150 = arith.constant 150 : index
    %150 = memref.load %arg1[%c150] : memref<177xf32, #tpu.memory_space<smem>>
    %c151 = arith.constant 151 : index
    %151 = memref.load %arg1[%c151] : memref<177xf32, #tpu.memory_space<smem>>
    %c152 = arith.constant 152 : index
    %152 = memref.load %arg1[%c152] : memref<177xf32, #tpu.memory_space<smem>>
    %c153 = arith.constant 153 : index
    %153 = memref.load %arg1[%c153] : memref<177xf32, #tpu.memory_space<smem>>
    %c154 = arith.constant 154 : index
    %154 = memref.load %arg1[%c154] : memref<177xf32, #tpu.memory_space<smem>>
    %c155 = arith.constant 155 : index
    %155 = memref.load %arg1[%c155] : memref<177xf32, #tpu.memory_space<smem>>
    %c156 = arith.constant 156 : index
    %156 = memref.load %arg1[%c156] : memref<177xf32, #tpu.memory_space<smem>>
    %c157 = arith.constant 157 : index
    %157 = memref.load %arg1[%c157] : memref<177xf32, #tpu.memory_space<smem>>
    %c158 = arith.constant 158 : index
    %158 = memref.load %arg1[%c158] : memref<177xf32, #tpu.memory_space<smem>>
    %c159 = arith.constant 159 : index
    %159 = memref.load %arg1[%c159] : memref<177xf32, #tpu.memory_space<smem>>
    %c160 = arith.constant 160 : index
    %160 = memref.load %arg1[%c160] : memref<177xf32, #tpu.memory_space<smem>>
    %c161 = arith.constant 161 : index
    %161 = memref.load %arg1[%c161] : memref<177xf32, #tpu.memory_space<smem>>
    %c162 = arith.constant 162 : index
    %162 = memref.load %arg1[%c162] : memref<177xf32, #tpu.memory_space<smem>>
    %c163 = arith.constant 163 : index
    %163 = memref.load %arg1[%c163] : memref<177xf32, #tpu.memory_space<smem>>
    %c164 = arith.constant 164 : index
    %164 = memref.load %arg1[%c164] : memref<177xf32, #tpu.memory_space<smem>>
    %c165 = arith.constant 165 : index
    %165 = memref.load %arg1[%c165] : memref<177xf32, #tpu.memory_space<smem>>
    %c166 = arith.constant 166 : index
    %166 = memref.load %arg1[%c166] : memref<177xf32, #tpu.memory_space<smem>>
    %c167 = arith.constant 167 : index
    %167 = memref.load %arg1[%c167] : memref<177xf32, #tpu.memory_space<smem>>
    %c168 = arith.constant 168 : index
    %168 = memref.load %arg1[%c168] : memref<177xf32, #tpu.memory_space<smem>>
    %c169 = arith.constant 169 : index
    %169 = memref.load %arg1[%c169] : memref<177xf32, #tpu.memory_space<smem>>
    %c170 = arith.constant 170 : index
    %170 = memref.load %arg1[%c170] : memref<177xf32, #tpu.memory_space<smem>>
    %c171 = arith.constant 171 : index
    %171 = memref.load %arg1[%c171] : memref<177xf32, #tpu.memory_space<smem>>
    %c172 = arith.constant 172 : index
    %172 = memref.load %arg1[%c172] : memref<177xf32, #tpu.memory_space<smem>>
    %c173 = arith.constant 173 : index
    %173 = memref.load %arg1[%c173] : memref<177xf32, #tpu.memory_space<smem>>
    %c174 = arith.constant 174 : index
    %174 = memref.load %arg1[%c174] : memref<177xf32, #tpu.memory_space<smem>>
    %c175 = arith.constant 175 : index
    %175 = memref.load %arg1[%c175] : memref<177xf32, #tpu.memory_space<smem>>
    %c176 = arith.constant 176 : index
    %176 = memref.load %arg1[%c176] : memref<177xf32, #tpu.memory_space<smem>>
    %c0_0 = arith.constant 0 : index
    %c0_1 = arith.constant 0 : index
    %c0_2 = arith.constant 0 : index
    %177 = vector.load %arg2[%c0_0, %c0_1, %c0_2] : memref<2x8x128xf32, #tpu.memory_space<vmem>>, vector<1x8x128xf32>
    %178 = vector.shape_cast %177 : vector<1x8x128xf32> to vector<8x128xf32>
    %c1_3 = arith.constant 1 : index
    %c0_4 = arith.constant 0 : index
    %c0_5 = arith.constant 0 : index
    %179 = vector.load %arg2[%c1_3, %c0_4, %c0_5] : memref<2x8x128xf32, #tpu.memory_space<vmem>>, vector<1x8x128xf32>
    %180 = vector.shape_cast %179 : vector<1x8x128xf32> to vector<8x128xf32>
    %c0_6 = arith.constant 0 : index
    %c0_7 = arith.constant 0 : index
    %c0_8 = arith.constant 0 : index
    %181 = vector.load %arg3[%c0_6, %c0_7, %c0_8] : memref<2x8x128xf32, #tpu.memory_space<vmem>>, vector<1x8x128xf32>
    %182 = vector.shape_cast %181 : vector<1x8x128xf32> to vector<8x128xf32>
    %c1_9 = arith.constant 1 : index
    %c0_10 = arith.constant 0 : index
    %c0_11 = arith.constant 0 : index
    %183 = vector.load %arg3[%c1_9, %c0_10, %c0_11] : memref<2x8x128xf32, #tpu.memory_space<vmem>>, vector<1x8x128xf32>
    %184 = vector.shape_cast %183 : vector<1x8x128xf32> to vector<8x128xf32>
    %185 = vector.broadcast %33 : f32 to vector<8x128xf32>
    %186 = arith.mulf %185, %178 : vector<8x128xf32>
    %187 = vector.broadcast %34 : f32 to vector<8x128xf32>
    %188 = arith.mulf %187, %180 : vector<8x128xf32>
    %189 = arith.addf %186, %188 : vector<8x128xf32>
    %190 = vector.broadcast %39 : f32 to vector<8x128xf32>
    %191 = arith.addf %189, %190 : vector<8x128xf32>
    %192 = vector.broadcast %35 : f32 to vector<8x128xf32>
    %193 = arith.mulf %192, %178 : vector<8x128xf32>
    %194 = vector.broadcast %36 : f32 to vector<8x128xf32>
    %195 = arith.mulf %194, %180 : vector<8x128xf32>
    %196 = arith.addf %193, %195 : vector<8x128xf32>
    %197 = vector.broadcast %40 : f32 to vector<8x128xf32>
    %198 = arith.addf %196, %197 : vector<8x128xf32>
    %199 = vector.broadcast %37 : f32 to vector<8x128xf32>
    %200 = arith.mulf %199, %178 : vector<8x128xf32>
    %201 = vector.broadcast %38 : f32 to vector<8x128xf32>
    %202 = arith.mulf %201, %180 : vector<8x128xf32>
    %203 = arith.addf %200, %202 : vector<8x128xf32>
    %204 = vector.broadcast %41 : f32 to vector<8x128xf32>
    %205 = arith.addf %203, %204 : vector<8x128xf32>
    %206 = vector.broadcast %147 : f32 to vector<8x128xf32>
    %207 = arith.mulf %206, %178 : vector<8x128xf32>
    %208 = vector.broadcast %148 : f32 to vector<8x128xf32>
    %209 = arith.mulf %208, %180 : vector<8x128xf32>
    %210 = arith.addf %207, %209 : vector<8x128xf32>
    %211 = vector.broadcast %151 : f32 to vector<8x128xf32>
    %212 = arith.addf %210, %211 : vector<8x128xf32>
    %213 = vector.broadcast %149 : f32 to vector<8x128xf32>
    %214 = arith.mulf %213, %178 : vector<8x128xf32>
    %215 = vector.broadcast %150 : f32 to vector<8x128xf32>
    %216 = arith.mulf %215, %180 : vector<8x128xf32>
    %217 = arith.addf %214, %216 : vector<8x128xf32>
    %218 = vector.broadcast %152 : f32 to vector<8x128xf32>
    %219 = arith.addf %217, %218 : vector<8x128xf32>
    %220 = arith.mulf %182, %212 : vector<8x128xf32>
    %221 = arith.mulf %184, %219 : vector<8x128xf32>
    %222 = vector.broadcast %127 : f32 to vector<8x128xf32>
    %223 = arith.mulf %222, %220 : vector<8x128xf32>
    %224 = vector.broadcast %128 : f32 to vector<8x128xf32>
    %225 = arith.mulf %224, %221 : vector<8x128xf32>
    %226 = arith.addf %223, %225 : vector<8x128xf32>
    %227 = vector.broadcast %129 : f32 to vector<8x128xf32>
    %228 = arith.mulf %227, %220 : vector<8x128xf32>
    %229 = vector.broadcast %130 : f32 to vector<8x128xf32>
    %230 = arith.mulf %229, %221 : vector<8x128xf32>
    %231 = arith.addf %228, %230 : vector<8x128xf32>
    %232 = vector.broadcast %131 : f32 to vector<8x128xf32>
    %233 = arith.mulf %232, %220 : vector<8x128xf32>
    %234 = vector.broadcast %132 : f32 to vector<8x128xf32>
    %235 = arith.mulf %234, %221 : vector<8x128xf32>
    %236 = arith.addf %233, %235 : vector<8x128xf32>
    %237 = arith.addf %191, %226 : vector<8x128xf32>
    %238 = arith.addf %198, %231 : vector<8x128xf32>
    %239 = arith.addf %205, %236 : vector<8x128xf32>
    %cst = arith.constant 0.000000e+00 : f32
    %240 = vector.broadcast %cst : f32 to vector<8x128xf32>
    %241 = arith.maximumf %237, %240 : vector<8x128xf32>
    %242 = math.absf %237 : vector<8x128xf32>
    %cst_12 = arith.constant 0.000000e+00 : f32
    %243 = vector.broadcast %cst_12 : f32 to vector<8x128xf32>
    %244 = arith.subf %243, %242 : vector<8x128xf32>
    %245 = math.exp %244 : vector<8x128xf32>
    %246 = math.log1p %245 : vector<8x128xf32>
    %247 = arith.addf %241, %246 : vector<8x128xf32>
    %cst_13 = arith.constant 0.000000e+00 : f32
    %248 = vector.broadcast %cst_13 : f32 to vector<8x128xf32>
    %249 = arith.maximumf %238, %248 : vector<8x128xf32>
    %250 = math.absf %238 : vector<8x128xf32>
    %cst_14 = arith.constant 0.000000e+00 : f32
    %251 = vector.broadcast %cst_14 : f32 to vector<8x128xf32>
    %252 = arith.subf %251, %250 : vector<8x128xf32>
    %253 = math.exp %252 : vector<8x128xf32>
    %254 = math.log1p %253 : vector<8x128xf32>
    %255 = arith.addf %249, %254 : vector<8x128xf32>
    %cst_15 = arith.constant 0.000000e+00 : f32
    %256 = vector.broadcast %cst_15 : f32 to vector<8x128xf32>
    %257 = arith.maximumf %239, %256 : vector<8x128xf32>
    %258 = math.absf %239 : vector<8x128xf32>
    %cst_16 = arith.constant 0.000000e+00 : f32
    %259 = vector.broadcast %cst_16 : f32 to vector<8x128xf32>
    %260 = arith.subf %259, %258 : vector<8x128xf32>
    %261 = math.exp %260 : vector<8x128xf32>
    %262 = math.log1p %261 : vector<8x128xf32>
    %263 = arith.addf %257, %262 : vector<8x128xf32>
    %264 = vector.broadcast %0 : f32 to vector<8x128xf32>
    %265 = arith.mulf %264, %178 : vector<8x128xf32>
    %266 = vector.broadcast %1 : f32 to vector<8x128xf32>
    %267 = arith.mulf %266, %180 : vector<8x128xf32>
    %268 = arith.addf %265, %267 : vector<8x128xf32>
    %269 = vector.broadcast %6 : f32 to vector<8x128xf32>
    %270 = arith.addf %268, %269 : vector<8x128xf32>
    %271 = vector.broadcast %2 : f32 to vector<8x128xf32>
    %272 = arith.mulf %271, %178 : vector<8x128xf32>
    %273 = vector.broadcast %3 : f32 to vector<8x128xf32>
    %274 = arith.mulf %273, %180 : vector<8x128xf32>
    %275 = arith.addf %272, %274 : vector<8x128xf32>
    %276 = vector.broadcast %7 : f32 to vector<8x128xf32>
    %277 = arith.addf %275, %276 : vector<8x128xf32>
    %278 = vector.broadcast %4 : f32 to vector<8x128xf32>
    %279 = arith.mulf %278, %178 : vector<8x128xf32>
    %280 = vector.broadcast %5 : f32 to vector<8x128xf32>
    %281 = arith.mulf %280, %180 : vector<8x128xf32>
    %282 = arith.addf %279, %281 : vector<8x128xf32>
    %283 = vector.broadcast %8 : f32 to vector<8x128xf32>
    %284 = arith.addf %282, %283 : vector<8x128xf32>
    %cst_17 = arith.constant 0.000000e+00 : f32
    %285 = vector.broadcast %cst_17 : f32 to vector<8x128xf32>
    %286 = arith.maximumf %270, %285 : vector<8x128xf32>
    %287 = math.absf %270 : vector<8x128xf32>
    %cst_18 = arith.constant 0.000000e+00 : f32
    %288 = vector.broadcast %cst_18 : f32 to vector<8x128xf32>
    %289 = arith.subf %288, %287 : vector<8x128xf32>
    %290 = math.exp %289 : vector<8x128xf32>
    %291 = math.log1p %290 : vector<8x128xf32>
    %292 = arith.addf %286, %291 : vector<8x128xf32>
    %cst_19 = arith.constant 0.000000e+00 : f32
    %293 = vector.broadcast %cst_19 : f32 to vector<8x128xf32>
    %294 = arith.maximumf %277, %293 : vector<8x128xf32>
    %295 = math.absf %277 : vector<8x128xf32>
    %cst_20 = arith.constant 0.000000e+00 : f32
    %296 = vector.broadcast %cst_20 : f32 to vector<8x128xf32>
    %297 = arith.subf %296, %295 : vector<8x128xf32>
    %298 = math.exp %297 : vector<8x128xf32>
    %299 = math.log1p %298 : vector<8x128xf32>
    %300 = arith.addf %294, %299 : vector<8x128xf32>
    %cst_21 = arith.constant 0.000000e+00 : f32
    %301 = vector.broadcast %cst_21 : f32 to vector<8x128xf32>
    %302 = arith.maximumf %284, %301 : vector<8x128xf32>
    %303 = math.absf %284 : vector<8x128xf32>
    %cst_22 = arith.constant 0.000000e+00 : f32
    %304 = vector.broadcast %cst_22 : f32 to vector<8x128xf32>
    %305 = arith.subf %304, %303 : vector<8x128xf32>
    %306 = math.exp %305 : vector<8x128xf32>
    %307 = math.log1p %306 : vector<8x128xf32>
    %308 = arith.addf %302, %307 : vector<8x128xf32>
    %309 = vector.broadcast %42 : f32 to vector<8x128xf32>
    %310 = arith.mulf %309, %292 : vector<8x128xf32>
    %311 = vector.broadcast %43 : f32 to vector<8x128xf32>
    %312 = arith.mulf %311, %300 : vector<8x128xf32>
    %313 = arith.addf %310, %312 : vector<8x128xf32>
    %314 = vector.broadcast %44 : f32 to vector<8x128xf32>
    %315 = arith.mulf %314, %308 : vector<8x128xf32>
    %316 = arith.addf %313, %315 : vector<8x128xf32>
    %317 = vector.broadcast %51 : f32 to vector<8x128xf32>
    %318 = arith.addf %316, %317 : vector<8x128xf32>
    %319 = vector.broadcast %45 : f32 to vector<8x128xf32>
    %320 = arith.mulf %319, %292 : vector<8x128xf32>
    %321 = vector.broadcast %46 : f32 to vector<8x128xf32>
    %322 = arith.mulf %321, %300 : vector<8x128xf32>
    %323 = arith.addf %320, %322 : vector<8x128xf32>
    %324 = vector.broadcast %47 : f32 to vector<8x128xf32>
    %325 = arith.mulf %324, %308 : vector<8x128xf32>
    %326 = arith.addf %323, %325 : vector<8x128xf32>
    %327 = vector.broadcast %52 : f32 to vector<8x128xf32>
    %328 = arith.addf %326, %327 : vector<8x128xf32>
    %329 = vector.broadcast %48 : f32 to vector<8x128xf32>
    %330 = arith.mulf %329, %292 : vector<8x128xf32>
    %331 = vector.broadcast %49 : f32 to vector<8x128xf32>
    %332 = arith.mulf %331, %300 : vector<8x128xf32>
    %333 = arith.addf %330, %332 : vector<8x128xf32>
    %334 = vector.broadcast %50 : f32 to vector<8x128xf32>
    %335 = arith.mulf %334, %308 : vector<8x128xf32>
    %336 = arith.addf %333, %335 : vector<8x128xf32>
    %337 = vector.broadcast %53 : f32 to vector<8x128xf32>
    %338 = arith.addf %336, %337 : vector<8x128xf32>
    %339 = vector.broadcast %91 : f32 to vector<8x128xf32>
    %340 = arith.mulf %339, %292 : vector<8x128xf32>
    %341 = vector.broadcast %92 : f32 to vector<8x128xf32>
    %342 = arith.mulf %341, %300 : vector<8x128xf32>
    %343 = arith.addf %340, %342 : vector<8x128xf32>
    %344 = vector.broadcast %93 : f32 to vector<8x128xf32>
    %345 = arith.mulf %344, %308 : vector<8x128xf32>
    %346 = arith.addf %343, %345 : vector<8x128xf32>
    %347 = vector.broadcast %100 : f32 to vector<8x128xf32>
    %348 = arith.addf %346, %347 : vector<8x128xf32>
    %349 = vector.broadcast %94 : f32 to vector<8x128xf32>
    %350 = arith.mulf %349, %292 : vector<8x128xf32>
    %351 = vector.broadcast %95 : f32 to vector<8x128xf32>
    %352 = arith.mulf %351, %300 : vector<8x128xf32>
    %353 = arith.addf %350, %352 : vector<8x128xf32>
    %354 = vector.broadcast %96 : f32 to vector<8x128xf32>
    %355 = arith.mulf %354, %308 : vector<8x128xf32>
    %356 = arith.addf %353, %355 : vector<8x128xf32>
    %357 = vector.broadcast %101 : f32 to vector<8x128xf32>
    %358 = arith.addf %356, %357 : vector<8x128xf32>
    %359 = vector.broadcast %97 : f32 to vector<8x128xf32>
    %360 = arith.mulf %359, %292 : vector<8x128xf32>
    %361 = vector.broadcast %98 : f32 to vector<8x128xf32>
    %362 = arith.mulf %361, %300 : vector<8x128xf32>
    %363 = arith.addf %360, %362 : vector<8x128xf32>
    %364 = vector.broadcast %99 : f32 to vector<8x128xf32>
    %365 = arith.mulf %364, %308 : vector<8x128xf32>
    %366 = arith.addf %363, %365 : vector<8x128xf32>
    %367 = vector.broadcast %102 : f32 to vector<8x128xf32>
    %368 = arith.addf %366, %367 : vector<8x128xf32>
    %cst_23 = arith.constant 0.000000e+00 : f32
    %369 = vector.broadcast %cst_23 : f32 to vector<8x128xf32>
    %370 = arith.maximumf %348, %369 : vector<8x128xf32>
    %371 = math.absf %348 : vector<8x128xf32>
    %cst_24 = arith.constant 0.000000e+00 : f32
    %372 = vector.broadcast %cst_24 : f32 to vector<8x128xf32>
    %373 = arith.subf %372, %371 : vector<8x128xf32>
    %374 = math.exp %373 : vector<8x128xf32>
    %375 = math.log1p %374 : vector<8x128xf32>
    %376 = arith.addf %370, %375 : vector<8x128xf32>
    %cst_25 = arith.constant 0.000000e+00 : f32
    %377 = vector.broadcast %cst_25 : f32 to vector<8x128xf32>
    %378 = arith.maximumf %358, %377 : vector<8x128xf32>
    %379 = math.absf %358 : vector<8x128xf32>
    %cst_26 = arith.constant 0.000000e+00 : f32
    %380 = vector.broadcast %cst_26 : f32 to vector<8x128xf32>
    %381 = arith.subf %380, %379 : vector<8x128xf32>
    %382 = math.exp %381 : vector<8x128xf32>
    %383 = math.log1p %382 : vector<8x128xf32>
    %384 = arith.addf %378, %383 : vector<8x128xf32>
    %cst_27 = arith.constant 0.000000e+00 : f32
    %385 = vector.broadcast %cst_27 : f32 to vector<8x128xf32>
    %386 = arith.maximumf %368, %385 : vector<8x128xf32>
    %387 = math.absf %368 : vector<8x128xf32>
    %cst_28 = arith.constant 0.000000e+00 : f32
    %388 = vector.broadcast %cst_28 : f32 to vector<8x128xf32>
    %389 = arith.subf %388, %387 : vector<8x128xf32>
    %390 = math.exp %389 : vector<8x128xf32>
    %391 = math.log1p %390 : vector<8x128xf32>
    %392 = arith.addf %386, %391 : vector<8x128xf32>
    %393 = arith.mulf %247, %376 : vector<8x128xf32>
    %394 = arith.mulf %255, %384 : vector<8x128xf32>
    %395 = arith.mulf %263, %392 : vector<8x128xf32>
    %396 = vector.broadcast %70 : f32 to vector<8x128xf32>
    %397 = arith.mulf %396, %393 : vector<8x128xf32>
    %398 = vector.broadcast %71 : f32 to vector<8x128xf32>
    %399 = arith.mulf %398, %394 : vector<8x128xf32>
    %400 = arith.addf %397, %399 : vector<8x128xf32>
    %401 = vector.broadcast %72 : f32 to vector<8x128xf32>
    %402 = arith.mulf %401, %395 : vector<8x128xf32>
    %403 = arith.addf %400, %402 : vector<8x128xf32>
    %404 = vector.broadcast %73 : f32 to vector<8x128xf32>
    %405 = arith.mulf %404, %393 : vector<8x128xf32>
    %406 = vector.broadcast %74 : f32 to vector<8x128xf32>
    %407 = arith.mulf %406, %394 : vector<8x128xf32>
    %408 = arith.addf %405, %407 : vector<8x128xf32>
    %409 = vector.broadcast %75 : f32 to vector<8x128xf32>
    %410 = arith.mulf %409, %395 : vector<8x128xf32>
    %411 = arith.addf %408, %410 : vector<8x128xf32>
    %412 = vector.broadcast %76 : f32 to vector<8x128xf32>
    %413 = arith.mulf %412, %393 : vector<8x128xf32>
    %414 = vector.broadcast %77 : f32 to vector<8x128xf32>
    %415 = arith.mulf %414, %394 : vector<8x128xf32>
    %416 = arith.addf %413, %415 : vector<8x128xf32>
    %417 = vector.broadcast %78 : f32 to vector<8x128xf32>
    %418 = arith.mulf %417, %395 : vector<8x128xf32>
    %419 = arith.addf %416, %418 : vector<8x128xf32>
    %420 = vector.broadcast %153 : f32 to vector<8x128xf32>
    %421 = arith.mulf %420, %292 : vector<8x128xf32>
    %422 = vector.broadcast %154 : f32 to vector<8x128xf32>
    %423 = arith.mulf %422, %300 : vector<8x128xf32>
    %424 = arith.addf %421, %423 : vector<8x128xf32>
    %425 = vector.broadcast %155 : f32 to vector<8x128xf32>
    %426 = arith.mulf %425, %308 : vector<8x128xf32>
    %427 = arith.addf %424, %426 : vector<8x128xf32>
    %428 = vector.broadcast %159 : f32 to vector<8x128xf32>
    %429 = arith.addf %427, %428 : vector<8x128xf32>
    %430 = vector.broadcast %156 : f32 to vector<8x128xf32>
    %431 = arith.mulf %430, %292 : vector<8x128xf32>
    %432 = vector.broadcast %157 : f32 to vector<8x128xf32>
    %433 = arith.mulf %432, %300 : vector<8x128xf32>
    %434 = arith.addf %431, %433 : vector<8x128xf32>
    %435 = vector.broadcast %158 : f32 to vector<8x128xf32>
    %436 = arith.mulf %435, %308 : vector<8x128xf32>
    %437 = arith.addf %434, %436 : vector<8x128xf32>
    %438 = vector.broadcast %160 : f32 to vector<8x128xf32>
    %439 = arith.addf %437, %438 : vector<8x128xf32>
    %440 = arith.mulf %182, %429 : vector<8x128xf32>
    %441 = arith.mulf %184, %439 : vector<8x128xf32>
    %442 = vector.broadcast %133 : f32 to vector<8x128xf32>
    %443 = arith.mulf %442, %440 : vector<8x128xf32>
    %444 = vector.broadcast %134 : f32 to vector<8x128xf32>
    %445 = arith.mulf %444, %441 : vector<8x128xf32>
    %446 = arith.addf %443, %445 : vector<8x128xf32>
    %447 = vector.broadcast %135 : f32 to vector<8x128xf32>
    %448 = arith.mulf %447, %440 : vector<8x128xf32>
    %449 = vector.broadcast %136 : f32 to vector<8x128xf32>
    %450 = arith.mulf %449, %441 : vector<8x128xf32>
    %451 = arith.addf %448, %450 : vector<8x128xf32>
    %452 = vector.broadcast %137 : f32 to vector<8x128xf32>
    %453 = arith.mulf %452, %440 : vector<8x128xf32>
    %454 = vector.broadcast %138 : f32 to vector<8x128xf32>
    %455 = arith.mulf %454, %441 : vector<8x128xf32>
    %456 = arith.addf %453, %455 : vector<8x128xf32>
    %457 = arith.addf %318, %403 : vector<8x128xf32>
    %458 = arith.addf %328, %411 : vector<8x128xf32>
    %459 = arith.addf %338, %419 : vector<8x128xf32>
    %460 = arith.addf %457, %446 : vector<8x128xf32>
    %461 = arith.addf %458, %451 : vector<8x128xf32>
    %462 = arith.addf %459, %456 : vector<8x128xf32>
    %cst_29 = arith.constant 0.000000e+00 : f32
    %463 = vector.broadcast %cst_29 : f32 to vector<8x128xf32>
    %464 = arith.maximumf %460, %463 : vector<8x128xf32>
    %465 = math.absf %460 : vector<8x128xf32>
    %cst_30 = arith.constant 0.000000e+00 : f32
    %466 = vector.broadcast %cst_30 : f32 to vector<8x128xf32>
    %467 = arith.subf %466, %465 : vector<8x128xf32>
    %468 = math.exp %467 : vector<8x128xf32>
    %469 = math.log1p %468 : vector<8x128xf32>
    %470 = arith.addf %464, %469 : vector<8x128xf32>
    %cst_31 = arith.constant 0.000000e+00 : f32
    %471 = vector.broadcast %cst_31 : f32 to vector<8x128xf32>
    %472 = arith.maximumf %461, %471 : vector<8x128xf32>
    %473 = math.absf %461 : vector<8x128xf32>
    %cst_32 = arith.constant 0.000000e+00 : f32
    %474 = vector.broadcast %cst_32 : f32 to vector<8x128xf32>
    %475 = arith.subf %474, %473 : vector<8x128xf32>
    %476 = math.exp %475 : vector<8x128xf32>
    %477 = math.log1p %476 : vector<8x128xf32>
    %478 = arith.addf %472, %477 : vector<8x128xf32>
    %cst_33 = arith.constant 0.000000e+00 : f32
    %479 = vector.broadcast %cst_33 : f32 to vector<8x128xf32>
    %480 = arith.maximumf %462, %479 : vector<8x128xf32>
    %481 = math.absf %462 : vector<8x128xf32>
    %cst_34 = arith.constant 0.000000e+00 : f32
    %482 = vector.broadcast %cst_34 : f32 to vector<8x128xf32>
    %483 = arith.subf %482, %481 : vector<8x128xf32>
    %484 = math.exp %483 : vector<8x128xf32>
    %485 = math.log1p %484 : vector<8x128xf32>
    %486 = arith.addf %480, %485 : vector<8x128xf32>
    %487 = vector.broadcast %9 : f32 to vector<8x128xf32>
    %488 = arith.mulf %487, %292 : vector<8x128xf32>
    %489 = vector.broadcast %10 : f32 to vector<8x128xf32>
    %490 = arith.mulf %489, %300 : vector<8x128xf32>
    %491 = arith.addf %488, %490 : vector<8x128xf32>
    %492 = vector.broadcast %11 : f32 to vector<8x128xf32>
    %493 = arith.mulf %492, %308 : vector<8x128xf32>
    %494 = arith.addf %491, %493 : vector<8x128xf32>
    %495 = vector.broadcast %18 : f32 to vector<8x128xf32>
    %496 = arith.addf %494, %495 : vector<8x128xf32>
    %497 = vector.broadcast %12 : f32 to vector<8x128xf32>
    %498 = arith.mulf %497, %292 : vector<8x128xf32>
    %499 = vector.broadcast %13 : f32 to vector<8x128xf32>
    %500 = arith.mulf %499, %300 : vector<8x128xf32>
    %501 = arith.addf %498, %500 : vector<8x128xf32>
    %502 = vector.broadcast %14 : f32 to vector<8x128xf32>
    %503 = arith.mulf %502, %308 : vector<8x128xf32>
    %504 = arith.addf %501, %503 : vector<8x128xf32>
    %505 = vector.broadcast %19 : f32 to vector<8x128xf32>
    %506 = arith.addf %504, %505 : vector<8x128xf32>
    %507 = vector.broadcast %15 : f32 to vector<8x128xf32>
    %508 = arith.mulf %507, %292 : vector<8x128xf32>
    %509 = vector.broadcast %16 : f32 to vector<8x128xf32>
    %510 = arith.mulf %509, %300 : vector<8x128xf32>
    %511 = arith.addf %508, %510 : vector<8x128xf32>
    %512 = vector.broadcast %17 : f32 to vector<8x128xf32>
    %513 = arith.mulf %512, %308 : vector<8x128xf32>
    %514 = arith.addf %511, %513 : vector<8x128xf32>
    %515 = vector.broadcast %20 : f32 to vector<8x128xf32>
    %516 = arith.addf %514, %515 : vector<8x128xf32>
    %cst_35 = arith.constant 0.000000e+00 : f32
    %517 = vector.broadcast %cst_35 : f32 to vector<8x128xf32>
    %518 = arith.maximumf %496, %517 : vector<8x128xf32>
    %519 = math.absf %496 : vector<8x128xf32>
    %cst_36 = arith.constant 0.000000e+00 : f32
    %520 = vector.broadcast %cst_36 : f32 to vector<8x128xf32>
    %521 = arith.subf %520, %519 : vector<8x128xf32>
    %522 = math.exp %521 : vector<8x128xf32>
    %523 = math.log1p %522 : vector<8x128xf32>
    %524 = arith.addf %518, %523 : vector<8x128xf32>
    %cst_37 = arith.constant 0.000000e+00 : f32
    %525 = vector.broadcast %cst_37 : f32 to vector<8x128xf32>
    %526 = arith.maximumf %506, %525 : vector<8x128xf32>
    %527 = math.absf %506 : vector<8x128xf32>
    %cst_38 = arith.constant 0.000000e+00 : f32
    %528 = vector.broadcast %cst_38 : f32 to vector<8x128xf32>
    %529 = arith.subf %528, %527 : vector<8x128xf32>
    %530 = math.exp %529 : vector<8x128xf32>
    %531 = math.log1p %530 : vector<8x128xf32>
    %532 = arith.addf %526, %531 : vector<8x128xf32>
    %cst_39 = arith.constant 0.000000e+00 : f32
    %533 = vector.broadcast %cst_39 : f32 to vector<8x128xf32>
    %534 = arith.maximumf %516, %533 : vector<8x128xf32>
    %535 = math.absf %516 : vector<8x128xf32>
    %cst_40 = arith.constant 0.000000e+00 : f32
    %536 = vector.broadcast %cst_40 : f32 to vector<8x128xf32>
    %537 = arith.subf %536, %535 : vector<8x128xf32>
    %538 = math.exp %537 : vector<8x128xf32>
    %539 = math.log1p %538 : vector<8x128xf32>
    %540 = arith.addf %534, %539 : vector<8x128xf32>
    %541 = vector.broadcast %54 : f32 to vector<8x128xf32>
    %542 = arith.mulf %541, %524 : vector<8x128xf32>
    %543 = vector.broadcast %55 : f32 to vector<8x128xf32>
    %544 = arith.mulf %543, %532 : vector<8x128xf32>
    %545 = arith.addf %542, %544 : vector<8x128xf32>
    %546 = vector.broadcast %56 : f32 to vector<8x128xf32>
    %547 = arith.mulf %546, %540 : vector<8x128xf32>
    %548 = arith.addf %545, %547 : vector<8x128xf32>
    %549 = vector.broadcast %63 : f32 to vector<8x128xf32>
    %550 = arith.addf %548, %549 : vector<8x128xf32>
    %551 = vector.broadcast %57 : f32 to vector<8x128xf32>
    %552 = arith.mulf %551, %524 : vector<8x128xf32>
    %553 = vector.broadcast %58 : f32 to vector<8x128xf32>
    %554 = arith.mulf %553, %532 : vector<8x128xf32>
    %555 = arith.addf %552, %554 : vector<8x128xf32>
    %556 = vector.broadcast %59 : f32 to vector<8x128xf32>
    %557 = arith.mulf %556, %540 : vector<8x128xf32>
    %558 = arith.addf %555, %557 : vector<8x128xf32>
    %559 = vector.broadcast %64 : f32 to vector<8x128xf32>
    %560 = arith.addf %558, %559 : vector<8x128xf32>
    %561 = vector.broadcast %60 : f32 to vector<8x128xf32>
    %562 = arith.mulf %561, %524 : vector<8x128xf32>
    %563 = vector.broadcast %61 : f32 to vector<8x128xf32>
    %564 = arith.mulf %563, %532 : vector<8x128xf32>
    %565 = arith.addf %562, %564 : vector<8x128xf32>
    %566 = vector.broadcast %62 : f32 to vector<8x128xf32>
    %567 = arith.mulf %566, %540 : vector<8x128xf32>
    %568 = arith.addf %565, %567 : vector<8x128xf32>
    %569 = vector.broadcast %65 : f32 to vector<8x128xf32>
    %570 = arith.addf %568, %569 : vector<8x128xf32>
    %571 = vector.broadcast %103 : f32 to vector<8x128xf32>
    %572 = arith.mulf %571, %524 : vector<8x128xf32>
    %573 = vector.broadcast %104 : f32 to vector<8x128xf32>
    %574 = arith.mulf %573, %532 : vector<8x128xf32>
    %575 = arith.addf %572, %574 : vector<8x128xf32>
    %576 = vector.broadcast %105 : f32 to vector<8x128xf32>
    %577 = arith.mulf %576, %540 : vector<8x128xf32>
    %578 = arith.addf %575, %577 : vector<8x128xf32>
    %579 = vector.broadcast %112 : f32 to vector<8x128xf32>
    %580 = arith.addf %578, %579 : vector<8x128xf32>
    %581 = vector.broadcast %106 : f32 to vector<8x128xf32>
    %582 = arith.mulf %581, %524 : vector<8x128xf32>
    %583 = vector.broadcast %107 : f32 to vector<8x128xf32>
    %584 = arith.mulf %583, %532 : vector<8x128xf32>
    %585 = arith.addf %582, %584 : vector<8x128xf32>
    %586 = vector.broadcast %108 : f32 to vector<8x128xf32>
    %587 = arith.mulf %586, %540 : vector<8x128xf32>
    %588 = arith.addf %585, %587 : vector<8x128xf32>
    %589 = vector.broadcast %113 : f32 to vector<8x128xf32>
    %590 = arith.addf %588, %589 : vector<8x128xf32>
    %591 = vector.broadcast %109 : f32 to vector<8x128xf32>
    %592 = arith.mulf %591, %524 : vector<8x128xf32>
    %593 = vector.broadcast %110 : f32 to vector<8x128xf32>
    %594 = arith.mulf %593, %532 : vector<8x128xf32>
    %595 = arith.addf %592, %594 : vector<8x128xf32>
    %596 = vector.broadcast %111 : f32 to vector<8x128xf32>
    %597 = arith.mulf %596, %540 : vector<8x128xf32>
    %598 = arith.addf %595, %597 : vector<8x128xf32>
    %599 = vector.broadcast %114 : f32 to vector<8x128xf32>
    %600 = arith.addf %598, %599 : vector<8x128xf32>
    %cst_41 = arith.constant 0.000000e+00 : f32
    %601 = vector.broadcast %cst_41 : f32 to vector<8x128xf32>
    %602 = arith.maximumf %580, %601 : vector<8x128xf32>
    %603 = math.absf %580 : vector<8x128xf32>
    %cst_42 = arith.constant 0.000000e+00 : f32
    %604 = vector.broadcast %cst_42 : f32 to vector<8x128xf32>
    %605 = arith.subf %604, %603 : vector<8x128xf32>
    %606 = math.exp %605 : vector<8x128xf32>
    %607 = math.log1p %606 : vector<8x128xf32>
    %608 = arith.addf %602, %607 : vector<8x128xf32>
    %cst_43 = arith.constant 0.000000e+00 : f32
    %609 = vector.broadcast %cst_43 : f32 to vector<8x128xf32>
    %610 = arith.maximumf %590, %609 : vector<8x128xf32>
    %611 = math.absf %590 : vector<8x128xf32>
    %cst_44 = arith.constant 0.000000e+00 : f32
    %612 = vector.broadcast %cst_44 : f32 to vector<8x128xf32>
    %613 = arith.subf %612, %611 : vector<8x128xf32>
    %614 = math.exp %613 : vector<8x128xf32>
    %615 = math.log1p %614 : vector<8x128xf32>
    %616 = arith.addf %610, %615 : vector<8x128xf32>
    %cst_45 = arith.constant 0.000000e+00 : f32
    %617 = vector.broadcast %cst_45 : f32 to vector<8x128xf32>
    %618 = arith.maximumf %600, %617 : vector<8x128xf32>
    %619 = math.absf %600 : vector<8x128xf32>
    %cst_46 = arith.constant 0.000000e+00 : f32
    %620 = vector.broadcast %cst_46 : f32 to vector<8x128xf32>
    %621 = arith.subf %620, %619 : vector<8x128xf32>
    %622 = math.exp %621 : vector<8x128xf32>
    %623 = math.log1p %622 : vector<8x128xf32>
    %624 = arith.addf %618, %623 : vector<8x128xf32>
    %625 = arith.mulf %470, %608 : vector<8x128xf32>
    %626 = arith.mulf %478, %616 : vector<8x128xf32>
    %627 = arith.mulf %486, %624 : vector<8x128xf32>
    %628 = vector.broadcast %79 : f32 to vector<8x128xf32>
    %629 = arith.mulf %628, %625 : vector<8x128xf32>
    %630 = vector.broadcast %80 : f32 to vector<8x128xf32>
    %631 = arith.mulf %630, %626 : vector<8x128xf32>
    %632 = arith.addf %629, %631 : vector<8x128xf32>
    %633 = vector.broadcast %81 : f32 to vector<8x128xf32>
    %634 = arith.mulf %633, %627 : vector<8x128xf32>
    %635 = arith.addf %632, %634 : vector<8x128xf32>
    %636 = vector.broadcast %82 : f32 to vector<8x128xf32>
    %637 = arith.mulf %636, %625 : vector<8x128xf32>
    %638 = vector.broadcast %83 : f32 to vector<8x128xf32>
    %639 = arith.mulf %638, %626 : vector<8x128xf32>
    %640 = arith.addf %637, %639 : vector<8x128xf32>
    %641 = vector.broadcast %84 : f32 to vector<8x128xf32>
    %642 = arith.mulf %641, %627 : vector<8x128xf32>
    %643 = arith.addf %640, %642 : vector<8x128xf32>
    %644 = vector.broadcast %85 : f32 to vector<8x128xf32>
    %645 = arith.mulf %644, %625 : vector<8x128xf32>
    %646 = vector.broadcast %86 : f32 to vector<8x128xf32>
    %647 = arith.mulf %646, %626 : vector<8x128xf32>
    %648 = arith.addf %645, %647 : vector<8x128xf32>
    %649 = vector.broadcast %87 : f32 to vector<8x128xf32>
    %650 = arith.mulf %649, %627 : vector<8x128xf32>
    %651 = arith.addf %648, %650 : vector<8x128xf32>
    %652 = vector.broadcast %161 : f32 to vector<8x128xf32>
    %653 = arith.mulf %652, %524 : vector<8x128xf32>
    %654 = vector.broadcast %162 : f32 to vector<8x128xf32>
    %655 = arith.mulf %654, %532 : vector<8x128xf32>
    %656 = arith.addf %653, %655 : vector<8x128xf32>
    %657 = vector.broadcast %163 : f32 to vector<8x128xf32>
    %658 = arith.mulf %657, %540 : vector<8x128xf32>
    %659 = arith.addf %656, %658 : vector<8x128xf32>
    %660 = vector.broadcast %167 : f32 to vector<8x128xf32>
    %661 = arith.addf %659, %660 : vector<8x128xf32>
    %662 = vector.broadcast %164 : f32 to vector<8x128xf32>
    %663 = arith.mulf %662, %524 : vector<8x128xf32>
    %664 = vector.broadcast %165 : f32 to vector<8x128xf32>
    %665 = arith.mulf %664, %532 : vector<8x128xf32>
    %666 = arith.addf %663, %665 : vector<8x128xf32>
    %667 = vector.broadcast %166 : f32 to vector<8x128xf32>
    %668 = arith.mulf %667, %540 : vector<8x128xf32>
    %669 = arith.addf %666, %668 : vector<8x128xf32>
    %670 = vector.broadcast %168 : f32 to vector<8x128xf32>
    %671 = arith.addf %669, %670 : vector<8x128xf32>
    %672 = arith.mulf %182, %661 : vector<8x128xf32>
    %673 = arith.mulf %184, %671 : vector<8x128xf32>
    %674 = vector.broadcast %139 : f32 to vector<8x128xf32>
    %675 = arith.mulf %674, %672 : vector<8x128xf32>
    %676 = vector.broadcast %140 : f32 to vector<8x128xf32>
    %677 = arith.mulf %676, %673 : vector<8x128xf32>
    %678 = arith.addf %675, %677 : vector<8x128xf32>
    %679 = vector.broadcast %141 : f32 to vector<8x128xf32>
    %680 = arith.mulf %679, %672 : vector<8x128xf32>
    %681 = vector.broadcast %142 : f32 to vector<8x128xf32>
    %682 = arith.mulf %681, %673 : vector<8x128xf32>
    %683 = arith.addf %680, %682 : vector<8x128xf32>
    %684 = vector.broadcast %143 : f32 to vector<8x128xf32>
    %685 = arith.mulf %684, %672 : vector<8x128xf32>
    %686 = vector.broadcast %144 : f32 to vector<8x128xf32>
    %687 = arith.mulf %686, %673 : vector<8x128xf32>
    %688 = arith.addf %685, %687 : vector<8x128xf32>
    %689 = arith.addf %550, %635 : vector<8x128xf32>
    %690 = arith.addf %560, %643 : vector<8x128xf32>
    %691 = arith.addf %570, %651 : vector<8x128xf32>
    %692 = arith.addf %689, %678 : vector<8x128xf32>
    %693 = arith.addf %690, %683 : vector<8x128xf32>
    %694 = arith.addf %691, %688 : vector<8x128xf32>
    %cst_47 = arith.constant 0.000000e+00 : f32
    %695 = vector.broadcast %cst_47 : f32 to vector<8x128xf32>
    %696 = arith.maximumf %692, %695 : vector<8x128xf32>
    %697 = math.absf %692 : vector<8x128xf32>
    %cst_48 = arith.constant 0.000000e+00 : f32
    %698 = vector.broadcast %cst_48 : f32 to vector<8x128xf32>
    %699 = arith.subf %698, %697 : vector<8x128xf32>
    %700 = math.exp %699 : vector<8x128xf32>
    %701 = math.log1p %700 : vector<8x128xf32>
    %702 = arith.addf %696, %701 : vector<8x128xf32>
    %cst_49 = arith.constant 0.000000e+00 : f32
    %703 = vector.broadcast %cst_49 : f32 to vector<8x128xf32>
    %704 = arith.maximumf %693, %703 : vector<8x128xf32>
    %705 = math.absf %693 : vector<8x128xf32>
    %cst_50 = arith.constant 0.000000e+00 : f32
    %706 = vector.broadcast %cst_50 : f32 to vector<8x128xf32>
    %707 = arith.subf %706, %705 : vector<8x128xf32>
    %708 = math.exp %707 : vector<8x128xf32>
    %709 = math.log1p %708 : vector<8x128xf32>
    %710 = arith.addf %704, %709 : vector<8x128xf32>
    %cst_51 = arith.constant 0.000000e+00 : f32
    %711 = vector.broadcast %cst_51 : f32 to vector<8x128xf32>
    %712 = arith.maximumf %694, %711 : vector<8x128xf32>
    %713 = math.absf %694 : vector<8x128xf32>
    %cst_52 = arith.constant 0.000000e+00 : f32
    %714 = vector.broadcast %cst_52 : f32 to vector<8x128xf32>
    %715 = arith.subf %714, %713 : vector<8x128xf32>
    %716 = math.exp %715 : vector<8x128xf32>
    %717 = math.log1p %716 : vector<8x128xf32>
    %718 = arith.addf %712, %717 : vector<8x128xf32>
    %719 = vector.broadcast %21 : f32 to vector<8x128xf32>
    %720 = arith.mulf %719, %524 : vector<8x128xf32>
    %721 = vector.broadcast %22 : f32 to vector<8x128xf32>
    %722 = arith.mulf %721, %532 : vector<8x128xf32>
    %723 = arith.addf %720, %722 : vector<8x128xf32>
    %724 = vector.broadcast %23 : f32 to vector<8x128xf32>
    %725 = arith.mulf %724, %540 : vector<8x128xf32>
    %726 = arith.addf %723, %725 : vector<8x128xf32>
    %727 = vector.broadcast %30 : f32 to vector<8x128xf32>
    %728 = arith.addf %726, %727 : vector<8x128xf32>
    %729 = vector.broadcast %24 : f32 to vector<8x128xf32>
    %730 = arith.mulf %729, %524 : vector<8x128xf32>
    %731 = vector.broadcast %25 : f32 to vector<8x128xf32>
    %732 = arith.mulf %731, %532 : vector<8x128xf32>
    %733 = arith.addf %730, %732 : vector<8x128xf32>
    %734 = vector.broadcast %26 : f32 to vector<8x128xf32>
    %735 = arith.mulf %734, %540 : vector<8x128xf32>
    %736 = arith.addf %733, %735 : vector<8x128xf32>
    %737 = vector.broadcast %31 : f32 to vector<8x128xf32>
    %738 = arith.addf %736, %737 : vector<8x128xf32>
    %739 = vector.broadcast %27 : f32 to vector<8x128xf32>
    %740 = arith.mulf %739, %524 : vector<8x128xf32>
    %741 = vector.broadcast %28 : f32 to vector<8x128xf32>
    %742 = arith.mulf %741, %532 : vector<8x128xf32>
    %743 = arith.addf %740, %742 : vector<8x128xf32>
    %744 = vector.broadcast %29 : f32 to vector<8x128xf32>
    %745 = arith.mulf %744, %540 : vector<8x128xf32>
    %746 = arith.addf %743, %745 : vector<8x128xf32>
    %747 = vector.broadcast %32 : f32 to vector<8x128xf32>
    %748 = arith.addf %746, %747 : vector<8x128xf32>
    %cst_53 = arith.constant 0.000000e+00 : f32
    %749 = vector.broadcast %cst_53 : f32 to vector<8x128xf32>
    %750 = arith.maximumf %728, %749 : vector<8x128xf32>
    %751 = math.absf %728 : vector<8x128xf32>
    %cst_54 = arith.constant 0.000000e+00 : f32
    %752 = vector.broadcast %cst_54 : f32 to vector<8x128xf32>
    %753 = arith.subf %752, %751 : vector<8x128xf32>
    %754 = math.exp %753 : vector<8x128xf32>
    %755 = math.log1p %754 : vector<8x128xf32>
    %756 = arith.addf %750, %755 : vector<8x128xf32>
    %cst_55 = arith.constant 0.000000e+00 : f32
    %757 = vector.broadcast %cst_55 : f32 to vector<8x128xf32>
    %758 = arith.maximumf %738, %757 : vector<8x128xf32>
    %759 = math.absf %738 : vector<8x128xf32>
    %cst_56 = arith.constant 0.000000e+00 : f32
    %760 = vector.broadcast %cst_56 : f32 to vector<8x128xf32>
    %761 = arith.subf %760, %759 : vector<8x128xf32>
    %762 = math.exp %761 : vector<8x128xf32>
    %763 = math.log1p %762 : vector<8x128xf32>
    %764 = arith.addf %758, %763 : vector<8x128xf32>
    %cst_57 = arith.constant 0.000000e+00 : f32
    %765 = vector.broadcast %cst_57 : f32 to vector<8x128xf32>
    %766 = arith.maximumf %748, %765 : vector<8x128xf32>
    %767 = math.absf %748 : vector<8x128xf32>
    %cst_58 = arith.constant 0.000000e+00 : f32
    %768 = vector.broadcast %cst_58 : f32 to vector<8x128xf32>
    %769 = arith.subf %768, %767 : vector<8x128xf32>
    %770 = math.exp %769 : vector<8x128xf32>
    %771 = math.log1p %770 : vector<8x128xf32>
    %772 = arith.addf %766, %771 : vector<8x128xf32>
    %773 = vector.broadcast %66 : f32 to vector<8x128xf32>
    %774 = arith.mulf %773, %756 : vector<8x128xf32>
    %775 = vector.broadcast %67 : f32 to vector<8x128xf32>
    %776 = arith.mulf %775, %764 : vector<8x128xf32>
    %777 = arith.addf %774, %776 : vector<8x128xf32>
    %778 = vector.broadcast %68 : f32 to vector<8x128xf32>
    %779 = arith.mulf %778, %772 : vector<8x128xf32>
    %780 = arith.addf %777, %779 : vector<8x128xf32>
    %781 = vector.broadcast %69 : f32 to vector<8x128xf32>
    %782 = arith.addf %780, %781 : vector<8x128xf32>
    %783 = vector.broadcast %115 : f32 to vector<8x128xf32>
    %784 = arith.mulf %783, %756 : vector<8x128xf32>
    %785 = vector.broadcast %116 : f32 to vector<8x128xf32>
    %786 = arith.mulf %785, %764 : vector<8x128xf32>
    %787 = arith.addf %784, %786 : vector<8x128xf32>
    %788 = vector.broadcast %117 : f32 to vector<8x128xf32>
    %789 = arith.mulf %788, %772 : vector<8x128xf32>
    %790 = arith.addf %787, %789 : vector<8x128xf32>
    %791 = vector.broadcast %124 : f32 to vector<8x128xf32>
    %792 = arith.addf %790, %791 : vector<8x128xf32>
    %793 = vector.broadcast %118 : f32 to vector<8x128xf32>
    %794 = arith.mulf %793, %756 : vector<8x128xf32>
    %795 = vector.broadcast %119 : f32 to vector<8x128xf32>
    %796 = arith.mulf %795, %764 : vector<8x128xf32>
    %797 = arith.addf %794, %796 : vector<8x128xf32>
    %798 = vector.broadcast %120 : f32 to vector<8x128xf32>
    %799 = arith.mulf %798, %772 : vector<8x128xf32>
    %800 = arith.addf %797, %799 : vector<8x128xf32>
    %801 = vector.broadcast %125 : f32 to vector<8x128xf32>
    %802 = arith.addf %800, %801 : vector<8x128xf32>
    %803 = vector.broadcast %121 : f32 to vector<8x128xf32>
    %804 = arith.mulf %803, %756 : vector<8x128xf32>
    %805 = vector.broadcast %122 : f32 to vector<8x128xf32>
    %806 = arith.mulf %805, %764 : vector<8x128xf32>
    %807 = arith.addf %804, %806 : vector<8x128xf32>
    %808 = vector.broadcast %123 : f32 to vector<8x128xf32>
    %809 = arith.mulf %808, %772 : vector<8x128xf32>
    %810 = arith.addf %807, %809 : vector<8x128xf32>
    %811 = vector.broadcast %126 : f32 to vector<8x128xf32>
    %812 = arith.addf %810, %811 : vector<8x128xf32>
    %cst_59 = arith.constant 0.000000e+00 : f32
    %813 = vector.broadcast %cst_59 : f32 to vector<8x128xf32>
    %814 = arith.maximumf %792, %813 : vector<8x128xf32>
    %815 = math.absf %792 : vector<8x128xf32>
    %cst_60 = arith.constant 0.000000e+00 : f32
    %816 = vector.broadcast %cst_60 : f32 to vector<8x128xf32>
    %817 = arith.subf %816, %815 : vector<8x128xf32>
    %818 = math.exp %817 : vector<8x128xf32>
    %819 = math.log1p %818 : vector<8x128xf32>
    %820 = arith.addf %814, %819 : vector<8x128xf32>
    %cst_61 = arith.constant 0.000000e+00 : f32
    %821 = vector.broadcast %cst_61 : f32 to vector<8x128xf32>
    %822 = arith.maximumf %802, %821 : vector<8x128xf32>
    %823 = math.absf %802 : vector<8x128xf32>
    %cst_62 = arith.constant 0.000000e+00 : f32
    %824 = vector.broadcast %cst_62 : f32 to vector<8x128xf32>
    %825 = arith.subf %824, %823 : vector<8x128xf32>
    %826 = math.exp %825 : vector<8x128xf32>
    %827 = math.log1p %826 : vector<8x128xf32>
    %828 = arith.addf %822, %827 : vector<8x128xf32>
    %cst_63 = arith.constant 0.000000e+00 : f32
    %829 = vector.broadcast %cst_63 : f32 to vector<8x128xf32>
    %830 = arith.maximumf %812, %829 : vector<8x128xf32>
    %831 = math.absf %812 : vector<8x128xf32>
    %cst_64 = arith.constant 0.000000e+00 : f32
    %832 = vector.broadcast %cst_64 : f32 to vector<8x128xf32>
    %833 = arith.subf %832, %831 : vector<8x128xf32>
    %834 = math.exp %833 : vector<8x128xf32>
    %835 = math.log1p %834 : vector<8x128xf32>
    %836 = arith.addf %830, %835 : vector<8x128xf32>
    %837 = arith.mulf %702, %820 : vector<8x128xf32>
    %838 = arith.mulf %710, %828 : vector<8x128xf32>
    %839 = arith.mulf %718, %836 : vector<8x128xf32>
    %840 = vector.broadcast %88 : f32 to vector<8x128xf32>
    %841 = arith.mulf %840, %837 : vector<8x128xf32>
    %842 = vector.broadcast %89 : f32 to vector<8x128xf32>
    %843 = arith.mulf %842, %838 : vector<8x128xf32>
    %844 = arith.addf %841, %843 : vector<8x128xf32>
    %845 = vector.broadcast %90 : f32 to vector<8x128xf32>
    %846 = arith.mulf %845, %839 : vector<8x128xf32>
    %847 = arith.addf %844, %846 : vector<8x128xf32>
    %848 = vector.broadcast %169 : f32 to vector<8x128xf32>
    %849 = arith.mulf %848, %756 : vector<8x128xf32>
    %850 = vector.broadcast %170 : f32 to vector<8x128xf32>
    %851 = arith.mulf %850, %764 : vector<8x128xf32>
    %852 = arith.addf %849, %851 : vector<8x128xf32>
    %853 = vector.broadcast %171 : f32 to vector<8x128xf32>
    %854 = arith.mulf %853, %772 : vector<8x128xf32>
    %855 = arith.addf %852, %854 : vector<8x128xf32>
    %856 = vector.broadcast %175 : f32 to vector<8x128xf32>
    %857 = arith.addf %855, %856 : vector<8x128xf32>
    %858 = vector.broadcast %172 : f32 to vector<8x128xf32>
    %859 = arith.mulf %858, %756 : vector<8x128xf32>
    %860 = vector.broadcast %173 : f32 to vector<8x128xf32>
    %861 = arith.mulf %860, %764 : vector<8x128xf32>
    %862 = arith.addf %859, %861 : vector<8x128xf32>
    %863 = vector.broadcast %174 : f32 to vector<8x128xf32>
    %864 = arith.mulf %863, %772 : vector<8x128xf32>
    %865 = arith.addf %862, %864 : vector<8x128xf32>
    %866 = vector.broadcast %176 : f32 to vector<8x128xf32>
    %867 = arith.addf %865, %866 : vector<8x128xf32>
    %868 = arith.mulf %182, %857 : vector<8x128xf32>
    %869 = arith.mulf %184, %867 : vector<8x128xf32>
    %870 = vector.broadcast %145 : f32 to vector<8x128xf32>
    %871 = arith.mulf %870, %868 : vector<8x128xf32>
    %872 = vector.broadcast %146 : f32 to vector<8x128xf32>
    %873 = arith.mulf %872, %869 : vector<8x128xf32>
    %874 = arith.addf %871, %873 : vector<8x128xf32>
    %875 = arith.addf %782, %847 : vector<8x128xf32>
    %876 = arith.addf %875, %874 : vector<8x128xf32>
    %cst_65 = arith.constant 0.000000e+00 : f32
    %877 = vector.broadcast %cst_65 : f32 to vector<8x128xf32>
    %878 = arith.maximumf %876, %877 : vector<8x128xf32>
    %879 = math.absf %876 : vector<8x128xf32>
    %cst_66 = arith.constant 0.000000e+00 : f32
    %880 = vector.broadcast %cst_66 : f32 to vector<8x128xf32>
    %881 = arith.subf %880, %879 : vector<8x128xf32>
    %882 = math.exp %881 : vector<8x128xf32>
    %883 = math.log1p %882 : vector<8x128xf32>
    %884 = arith.addf %878, %883 : vector<8x128xf32>
    %c0_67 = arith.constant 0 : index
    %c0_68 = arith.constant 0 : index
    %885 = vector.load %arg4[%c0_67, %c0_68] : memref<8x128xf32, #tpu.memory_space<vmem>>, vector<8x128xf32>
    tpu.vector_store %arg4[%c0_67, %c0_68], %884 {strides = array<i32>} : memref<8x128xf32, #tpu.memory_space<vmem>>, vector<8x128xf32>,
    return
  }
  func.func @transform_0(%arg0: i32, %arg1: memref<177xf32, #tpu.memory_space<smem>>) -> (i32, i32, i32) {
    %c0_i32 = arith.constant 0 : i32
    %c0_i32_0 = arith.constant 0 : i32
    %c0_i32_1 = arith.constant 0 : i32
    return %c0_i32, %c0_i32_0, %arg0 : i32, i32, i32
  }
  func.func @transform_1(%arg0: i32, %arg1: memref<177xf32, #tpu.memory_space<smem>>) -> (i32, i32, i32) {
    %c0_i32 = arith.constant 0 : i32
    %c0_i32_0 = arith.constant 0 : i32
    %c0_i32_1 = arith.constant 0 : i32
    return %c0_i32, %c0_i32_0, %arg0 : i32, i32, i32
  }
  func.func @transform_2(%arg0: i32, %arg1: memref<177xf32, #tpu.memory_space<smem>>) -> (i32, i32) {
    %c0_i32 = arith.constant 0 : i32
    %c0_i32_0 = arith.constant 0 : i32
    return %c0_i32, %arg0 : i32, i32
  }
}

</mosaic_0001>

<llo_original>
// kernel: dissipation_forward.1
$region0: #{dissipation_forward.1}
  #allocation0 [shape = 'u32[]', space=smem, size = 0x4, offset = 0x4, fixed_abs, tag = 'smem constant byte address 0x4 - core index']
  #allocation1 [shape = 'u32[144,128]{1,0:T(1,128)}', space=vmem, size = 0x12000, scoped, tag = 'internal scratch']
  #allocation2 [shape = 's32[1]{0}', space=sflag, size = 0x4, scoped, tag = 'scoped memory for dissipation_forward.1']
  #allocation3 [shape = 'u8[1024]{0}', space=smem, size = 0x400, scoped, tag = 'prefetched SMEM operand 0']
  %s0 = inlined_call_operand.vmem [shape: f32[177], index: 0, kind: input, shape index: {}]
  %s1 = inlined_call_operand.vmem [shape: f32[2,8,128], index: 1, kind: input, shape index: {}]
  %s2 = inlined_call_operand.vmem [shape: f32[2,8,128], index: 2, kind: input, shape index: {}]
  %s3 = inlined_call_operand.vmem [shape: f32[8,128], index: 3, kind: output, shape index: {}]
  %s4 = sld [smem:[#allocation0]]
  $region18: #{dissipation_forward.1} parent=0
    _
  %s6 = ssub.s32 1, %s4
  %s7 = scalar_select 0, %s6, %s4
  %s8 = sshll.u32 %s0, 4
  %s9 = int_to_ptr.vmem [resolvable:$true] %s8
  %11 = dma.vmem_to_smem %s9, 32, [#allocation3], [#allocation2]
  %12 = dma.done [#allocation2], 32
  %13 = sfence
  // Predicated region
  $region2: #{dissipation_forward.1} parent=0 // pred_check
    _
  $region3: #{dissipation_forward.1} parent=0 // pred_check_branch
    %15 = sbr.rel (0) target = $region5
  $region4: #{dissipation_forward.1} parent=0 // pred_region
    _
  $region5: #{dissipation_forward.1} parent=0 // pred_fallthru
    _
  // Predicated region
  $region6: #{dissipation_forward.1} parent=0 // pred_check
    _
  $region7: #{dissipation_forward.1} parent=0 // pred_check_branch
    %17 = sbr.rel (0) target = $region9
  $region8: #{dissipation_forward.1} parent=0 // pred_region
    _
  $region9: #{dissipation_forward.1} parent=0 // pred_fallthru
    _
  %s18 = sld [smem:[#allocation3]]
  %s19 = sld [smem:[#allocation3 + $0x1]]
  %s20 = sld [smem:[#allocation3 + $0x2]]
  %s21 = sld [smem:[#allocation3 + $0x3]]
  %s22 = sld [smem:[#allocation3 + $0x4]]
  %s23 = sld [smem:[#allocation3 + $0x5]]
  %s24 = sld [smem:[#allocation3 + $0x6]]
  %s25 = sld [smem:[#allocation3 + $0x7]]
  %s26 = sld [smem:[#allocation3 + $0x8]]
  %s27 = sld [smem:[#allocation3 + $0x9]]
  %s28 = sld [smem:[#allocation3 + $0xa]]
  %s29 = sld [smem:[#allocation3 + $0xb]]
  %s30 = sld [smem:[#allocation3 + $0xc]]
  %s31 = sld [smem:[#allocation3 + $0xd]]
  %s32 = sld [smem:[#allocation3 + $0xe]]
  %s33 = sld [smem:[#allocation3 + $0xf]]
  %s34 = sld [smem:[#allocation3 + $0x10]]
  %s35 = sld [smem:[#allocation3 + $0x11]]
  %s36 = sld [smem:[#allocation3 + $0x12]]
  %s37 = sld [smem:[#allocation3 + $0x13]]
  %s38 = sld [smem:[#allocation3 + $0x14]]
  %s39 = sld [smem:[#allocation3 + $0x15]]
  %s40 = sld [smem:[#allocation3 + $0x16]]
  %s41 = sld [smem:[#allocation3 + $0x17]]
  %s42 = sld [smem:[#allocation3 + $0x18]]
  %s43 = sld [smem:[#allocation3 + $0x19]]
  %s44 = sld [smem:[#allocation3 + $0x1a]]
  %s45 = sld [smem:[#allocation3 + $0x1b]]
  %s46 = sld [smem:[#allocation3 + $0x1c]]
  %s47 = sld [smem:[#allocation3 + $0x1d]]
  %s48 = sld [smem:[#allocation3 + $0x1e]]
  %s49 = sld [smem:[#allocation3 + $0x1f]]
  %s50 = sld [smem:[#allocation3 + $0x20]]
  %s51 = sld [smem:[#allocation3 + $0x21]]
  %s52 = sld [smem:[#allocation3 + $0x22]]
  %s53 = sld [smem:[#allocation3 + $0x23]]
  %s54 = sld [smem:[#allocation3 + $0x24]]
  %s55 = sld [smem:[#allocation3 + $0x25]]
  %s56 = sld [smem:[#allocation3 + $0x26]]
  %s57 = sld [smem:[#allocation3 + $0x27]]
  %s58 = sld [smem:[#allocation3 + $0x28]]
  %s59 = sld [smem:[#allocation3 + $0x29]]
  %s60 = sld [smem:[#allocation3 + $0x2a]]
  %s61 = sld [smem:[#allocation3 + $0x2b]]
  %s62 = sld [smem:[#allocation3 + $0x2c]]
  %s63 = sld [smem:[#allocation3 + $0x2d]]
  %s64 = sld [smem:[#allocation3 + $0x2e]]
  %s65 = sld [smem:[#allocation3 + $0x2f]]
  %s66 = sld [smem:[#allocation3 + $0x30]]
  %s67 = sld [smem:[#allocation3 + $0x31]]
  %s68 = sld [smem:[#allocation3 + $0x32]]
  %s69 = sld [smem:[#allocation3 + $0x33]]
  %s70 = sld [smem:[#allocation3 + $0x34]]
  %s71 = sld [smem:[#allocation3 + $0x35]]
  %s72 = sld [smem:[#allocation3 + $0x36]]
  %s73 = sld [smem:[#allocation3 + $0x37]]
  %s74 = sld [smem:[#allocation3 + $0x38]]
  %s75 = sld [smem:[#allocation3 + $0x39]]
  %s76 = sld [smem:[#allocation3 + $0x3a]]
  %s77 = sld [smem:[#allocation3 + $0x3b]]
  %s78 = sld [smem:[#allocation3 + $0x3c]]
  %s79 = sld [smem:[#allocation3 + $0x3d]]
  %s80 = sld [smem:[#allocation3 + $0x3e]]
  %s81 = sld [smem:[#allocation3 + $0x3f]]
  %s82 = sld [smem:[#allocation3 + $0x40]]
  %s83 = sld [smem:[#allocation3 + $0x41]]
  %s84 = sld [smem:[#allocation3 + $0x42]]
  %s85 = sld [smem:[#allocation3 + $0x43]]
  %s86 = sld [smem:[#allocation3 + $0x44]]
  %s87 = sld [smem:[#allocation3 + $0x45]]
  %s88 = sld [smem:[#allocation3 + $0x46]]
  %s89 = sld [smem:[#allocation3 + $0x47]]
  %s90 = sld [smem:[#allocation3 + $0x48]]
  %s91 = sld [smem:[#allocation3 + $0x49]]
  %s92 = sld [smem:[#allocation3 + $0x4a]]
  %s93 = sld [smem:[#allocation3 + $0x4b]]
  %s94 = sld [smem:[#allocation3 + $0x4c]]
  %s95 = sld [smem:[#allocation3 + $0x4d]]
  %s96 = sld [smem:[#allocation3 + $0x4e]]
  %s97 = sld [smem:[#allocation3 + $0x4f]]
  %s98 = sld [smem:[#allocation3 + $0x50]]
  %s99 = sld [smem:[#allocation3 + $0x51]]
  %s100 = sld [smem:[#allocation3 + $0x52]]
  %s101 = sld [smem:[#allocation3 + $0x53]]
  %s102 = sld [smem:[#allocation3 + $0x54]]
  %s103 = sld [smem:[#allocation3 + $0x55]]
  %s104 = sld [smem:[#allocation3 + $0x56]]
  %s105 = sld [smem:[#allocation3 + $0x57]]
  %s106 = sld [smem:[#allocation3 + $0x58]]
  %s107 = sld [smem:[#allocation3 + $0x59]]
  %s108 = sld [smem:[#allocation3 + $0x5a]]
  %s109 = sld [smem:[#allocation3 + $0x5b]]
  %s110 = sld [smem:[#allocation3 + $0x5c]]
  %s111 = sld [smem:[#allocation3 + $0x5d]]
  %s112 = sld [smem:[#allocation3 + $0x5e]]
  %s113 = sld [smem:[#allocation3 + $0x5f]]
  %s114 = sld [smem:[#allocation3 + $0x60]]
  %s115 = sld [smem:[#allocation3 + $0x61]]
  %s116 = sld [smem:[#allocation3 + $0x62]]
  %s117 = sld [smem:[#allocation3 + $0x63]]
  %s118 = sld [smem:[#allocation3 + $0x64]]
  %s119 = sld [smem:[#allocation3 + $0x65]]
  %s120 = sld [smem:[#allocation3 + $0x66]]
  %s121 = sld [smem:[#allocation3 + $0x67]]
  %s122 = sld [smem:[#allocation3 + $0x68]]
  %s123 = sld [smem:[#allocation3 + $0x69]]
  %s124 = sld [smem:[#allocation3 + $0x6a]]
  %s125 = sld [smem:[#allocation3 + $0x6b]]
  %s126 = sld [smem:[#allocation3 + $0x6c]]
  %s127 = sld [smem:[#allocation3 + $0x6d]]
  %s128 = sld [smem:[#allocation3 + $0x6e]]
  %s129 = sld [smem:[#allocation3 + $0x6f]]
  %s130 = sld [smem:[#allocation3 + $0x70]]
  %s131 = sld [smem:[#allocation3 + $0x71]]
  %s132 = sld [smem:[#allocation3 + $0x72]]
  %s133 = sld [smem:[#allocation3 + $0x73]]
  %s134 = sld [smem:[#allocation3 + $0x74]]
  %s135 = sld [smem:[#allocation3 + $0x75]]
  %s136 = sld [smem:[#allocation3 + $0x76]]
  %s137 = sld [smem:[#allocation3 + $0x77]]
  %s138 = sld [smem:[#allocation3 + $0x78]]
  %s139 = sld [smem:[#allocation3 + $0x79]]
  %s140 = sld [smem:[#allocation3 + $0x7a]]
  %s141 = sld [smem:[#allocation3 + $0x7b]]
  %s142 = sld [smem:[#allocation3 + $0x7c]]
  %s143 = sld [smem:[#allocation3 + $0x7d]]
  %s144 = sld [smem:[#allocation3 + $0x7e]]
  %s145 = sld [smem:[#allocation3 + $0x7f]]
  %s146 = sld [smem:[#allocation3 + $0x80]]
  %s147 = sld [smem:[#allocation3 + $0x81]]
  %s148 = sld [smem:[#allocation3 + $0x82]]
  %s149 = sld [smem:[#allocation3 + $0x83]]
  %s150 = sld [smem:[#allocation3 + $0x84]]
  %s151 = sld [smem:[#allocation3 + $0x85]]
  %s152 = sld [smem:[#allocation3 + $0x86]]
  %s153 = sld [smem:[#allocation3 + $0x87]]
  %s154 = sld [smem:[#allocation3 + $0x88]]
  %s155 = sld [smem:[#allocation3 + $0x89]]
  %s156 = sld [smem:[#allocation3 + $0x8a]]
  %s157 = sld [smem:[#allocation3 + $0x8b]]
  %s158 = sld [smem:[#allocation3 + $0x8c]]
  %s159 = sld [smem:[#allocation3 + $0x8d]]
  %s160 = sld [smem:[#allocation3 + $0x8e]]
  %s161 = sld [smem:[#allocation3 + $0x8f]]
  %s162 = sld [smem:[#allocation3 + $0x90]]
  %s163 = sld [smem:[#allocation3 + $0x91]]
  %s164 = sld [smem:[#allocation3 + $0x92]]
  %s165 = sld [smem:[#allocation3 + $0x93]]
  %s166 = sld [smem:[#allocation3 + $0x94]]
  %s167 = sld [smem:[#allocation3 + $0x95]]
  %s168 = sld [smem:[#allocation3 + $0x96]]
  %s169 = sld [smem:[#allocation3 + $0x97]]
  %s170 = sld [smem:[#allocation3 + $0x98]]
  %s171 = sld [smem:[#allocation3 + $0x99]]
  %s172 = sld [smem:[#allocation3 + $0x9a]]
  %s173 = sld [smem:[#allocation3 + $0x9b]]
  %s174 = sld [smem:[#allocation3 + $0x9c]]
  %s175 = sld [smem:[#allocation3 + $0x9d]]
  %s176 = sld [smem:[#allocation3 + $0x9e]]
  %s177 = sld [smem:[#allocation3 + $0x9f]]
  %s178 = sld [smem:[#allocation3 + $0xa0]]
  %s179 = sld [smem:[#allocation3 + $0xa1]]
  %s180 = sld [smem:[#allocation3 + $0xa2]]
  %s181 = sld [smem:[#allocation3 + $0xa3]]
  %s182 = sld [smem:[#allocation3 + $0xa4]]
  %s183 = sld [smem:[#allocation3 + $0xa5]]
  %s184 = sld [smem:[#allocation3 + $0xa6]]
  %s185 = sld [smem:[#allocation3 + $0xa7]]
  %s186 = sld [smem:[#allocation3 + $0xa8]]
  %s187 = sld [smem:[#allocation3 + $0xa9]]
  %s188 = sld [smem:[#allocation3 + $0xaa]]
  %s189 = sld [smem:[#allocation3 + $0xab]]
  %s190 = sld [smem:[#allocation3 + $0xac]]
  %s191 = sld [smem:[#allocation3 + $0xad]]
  %s192 = sld [smem:[#allocation3 + $0xae]]
  %s193 = sld [smem:[#allocation3 + $0xaf]]
  %s194 = sld [smem:[#allocation3 + $0xb0]]
  %v195 = vld [vmem:[%s1] sm:$0xff]
  %s196 = scalar_lea.vmem %s1, 8
  %v197 = vld [vmem:[%s196] sm:$0xff]
  %v198 = vld [vmem:[%s2] sm:$0xff]
  %s199 = scalar_lea.vmem %s2, 8
  %v200 = vld [vmem:[%s199] sm:$0xff]
  %v201 = vstv %s51
  %v202 = vmul.f32 %v201, %v195
  %v203 = vstv %s52
  %v204 = vmul.f32 %v203, %v197
  %v205 = vadd.f32 %v202, %v204
  %v206 = vstv %s57
  %v207 = vadd.f32 %v205, %v206
  %v208 = vstv %s53
  %v209 = vmul.f32 %v208, %v195
  %v210 = vstv %s54
  %v211 = vmul.f32 %v210, %v197
  %v212 = vadd.f32 %v209, %v211
  %v213 = vstv %s58
  %v214 = vadd.f32 %v212, %v213
  %v215 = vstv %s55
  %v216 = vmul.f32 %v215, %v195
  %v217 = vstv %s56
  %v218 = vmul.f32 %v217, %v197
  %v219 = vadd.f32 %v216, %v218
  %v220 = vstv %s59
  %v221 = vadd.f32 %v219, %v220
  %v222 = vstv %s165
  %v223 = vmul.f32 %v222, %v195
  %v224 = vstv %s166
  %v225 = vmul.f32 %v224, %v197
  %v226 = vadd.f32 %v223, %v225
  %v227 = vstv %s169
  %v228 = vadd.f32 %v226, %v227
  %v229 = vstv %s167
  %v230 = vmul.f32 %v229, %v195
  %v231 = vstv %s168
  %v232 = vmul.f32 %v231, %v197
  %v233 = vadd.f32 %v230, %v232
  %v234 = vstv %s170
  %v235 = vadd.f32 %v233, %v234
  %v236 = vmul.f32 %v198, %v228
  %v237 = vmul.f32 %v200, %v235
  %v238 = vstv %s145
  %v239 = vmul.f32 %v238, %v236
  %v240 = vstv %s146
  %v241 = vmul.f32 %v240, %v237
  %v242 = vadd.f32 %v239, %v241
  %v243 = vstv %s147
  %v244 = vmul.f32 %v243, %v236
  %v245 = vstv %s148
  %v246 = vmul.f32 %v245, %v237
  %v247 = vadd.f32 %v244, %v246
  %v248 = vstv %s149
  %v249 = vmul.f32 %v248, %v236
  %v250 = vstv %s150
  %v251 = vmul.f32 %v250, %v237
  %v252 = vadd.f32 %v249, %v251
  %v253 = vadd.f32 %v207, %v242
  %v254 = vadd.f32 %v214, %v247
  %v255 = vadd.f32 %v221, %v252
  %v256 = vmax.f32 %v253, 0.0
  %v257 = vand.u32 2147483647, %v253
  %v258 = vsub.f32 0.0, %v257
  %v259 = vmul.f32 %v258, 1.442695
  %v260 = vpow.pop %v259
  %v261 = vadd.f32 %v260, 1.0
  %v262 = vlog2.pop %v261
  %v263 = vmul.f32 %v262, 0.6931472
  %v264 = vmul.f32 -0.5, %v260
  %v265 = vadd.f32 %v264, 1.0
  %v266 = vmul.f32 %v265, %v260
  %v267 = vand.u32 2147483647, %v260
  %vm268 = vcmp.lt.f32.partialorder %v267, 0.0004427343
  %v269 = vsel %vm268, %v266, %v263
  %v270 = vadd.f32 %v256, %v269
  %v271 = vmax.f32 %v254, 0.0
  %v272 = vand.u32 2147483647, %v254
  %v273 = vsub.f32 0.0, %v272
  %v274 = vmul.f32 %v273, 1.442695
  %v275 = vpow.pop %v274
  %v276 = vadd.f32 %v275, 1.0
  %v277 = vlog2.pop %v276
  %v278 = vmul.f32 %v277, 0.6931472
  %v279 = vmul.f32 -0.5, %v275
  %v280 = vadd.f32 %v279, 1.0
  %v281 = vmul.f32 %v280, %v275
  %v282 = vand.u32 2147483647, %v275
  %vm283 = vcmp.lt.f32.partialorder %v282, 0.0004427343
  %v284 = vsel %vm283, %v281, %v278
  %v285 = vadd.f32 %v271, %v284
  %v286 = vmax.f32 %v255, 0.0
  %v287 = vand.u32 2147483647, %v255
  %v288 = vsub.f32 0.0, %v287
  %v289 = vmul.f32 %v288, 1.442695
  %v290 = vpow.pop %v289
  %v291 = vadd.f32 %v290, 1.0
  %v292 = vlog2.pop %v291
  %v293 = vmul.f32 %v292, 0.6931472
  %v294 = vmul.f32 -0.5, %v290
  %v295 = vadd.f32 %v294, 1.0
  %v296 = vmul.f32 %v295, %v290
  %v297 = vand.u32 2147483647, %v290
  %vm298 = vcmp.lt.f32.partialorder %v297, 0.0004427343
  %v299 = vsel %vm298, %v296, %v293
  %v300 = vadd.f32 %v286, %v299
  %v301 = vstv %s18
  %v302 = vmul.f32 %v301, %v195
  %v303 = vstv %s19
  %v304 = vmul.f32 %v303, %v197
  %v305 = vadd.f32 %v302, %v304
  %v306 = vstv %s24
  %v307 = vadd.f32 %v305, %v306
  %v308 = vstv %s20
  %v309 = vmul.f32 %v308, %v195
  %v310 = vstv %s21
  %v311 = vmul.f32 %v310, %v197
  %v312 = vadd.f32 %v309, %v311
  %v313 = vstv %s25
  %v314 = vadd.f32 %v312, %v313
  %v315 = vstv %s22
  %v316 = vmul.f32 %v315, %v195
  %v317 = vstv %s23
  %v318 = vmul.f32 %v317, %v197
  %v319 = vadd.f32 %v316, %v318
  %v320 = vstv %s26
  %v321 = vadd.f32 %v319, %v320
  %v322 = vmax.f32 %v307, 0.0
  %v323 = vand.u32 2147483647, %v307
  %v324 = vsub.f32 0.0, %v323
  %v325 = vmul.f32 %v324, 1.442695
  %v326 = vpow.pop %v325
  %v327 = vadd.f32 %v326, 1.0
  %v328 = vlog2.pop %v327
  %v329 = vmul.f32 %v328, 0.6931472
  %v330 = vmul.f32 -0.5, %v326
  %v331 = vadd.f32 %v330, 1.0
  %v332 = vmul.f32 %v331, %v326
  %v333 = vand.u32 2147483647, %v326
  %vm334 = vcmp.lt.f32.partialorder %v333, 0.0004427343
  %v335 = vsel %vm334, %v332, %v329
  %v336 = vadd.f32 %v322, %v335
  %v337 = vmax.f32 %v314, 0.0
  %v338 = vand.u32 2147483647, %v314
  %v339 = vsub.f32 0.0, %v338
  %v340 = vmul.f32 %v339, 1.442695
  %v341 = vpow.pop %v340
  %v342 = vadd.f32 %v341, 1.0
  %v343 = vlog2.pop %v342
  %v344 = vmul.f32 %v343, 0.6931472
  %v345 = vmul.f32 -0.5, %v341
  %v346 = vadd.f32 %v345, 1.0
  %v347 = vmul.f32 %v346, %v341
  %v348 = vand.u32 2147483647, %v341
  %vm349 = vcmp.lt.f32.partialorder %v348, 0.0004427343
  %v350 = vsel %vm349, %v347, %v344
  %v351 = vadd.f32 %v337, %v350
  %v352 = vmax.f32 %v321, 0.0
  %v353 = vand.u32 2147483647, %v321
  %v354 = vsub.f32 0.0, %v353
  %v355 = vmul.f32 %v354, 1.442695
  %v356 = vpow.pop %v355
  %v357 = vadd.f32 %v356, 1.0
  %v358 = vlog2.pop %v357
  %v359 = vmul.f32 %v358, 0.6931472
  %v360 = vmul.f32 -0.5, %v356
  %v361 = vadd.f32 %v360, 1.0
  %v362 = vmul.f32 %v361, %v356
  %v363 = vand.u32 2147483647, %v356
  %vm364 = vcmp.lt.f32.partialorder %v363, 0.0004427343
  %v365 = vsel %vm364, %v362, %v359
  %v366 = vadd.f32 %v352, %v365
  %v367 = vstv %s60
  %v368 = vmul.f32 %v367, %v336
  %v369 = vstv %s61
  %v370 = vmul.f32 %v369, %v351
  %v371 = vadd.f32 %v368, %v370
  %v372 = vstv %s62
  %v373 = vmul.f32 %v372, %v366
  %v374 = vadd.f32 %v371, %v373
  %v375 = vstv %s69
  %v376 = vadd.f32 %v374, %v375
  %v377 = vstv %s63
  %v378 = vmul.f32 %v377, %v336
  %v379 = vstv %s64
  %v380 = vmul.f32 %v379, %v351
  %v381 = vadd.f32 %v378, %v380
  %v382 = vstv %s65
  %v383 = vmul.f32 %v382, %v366
  %v384 = vadd.f32 %v381, %v383
  %v385 = vstv %s70
  %v386 = vadd.f32 %v384, %v385
  %v387 = vstv %s66
  %v388 = vmul.f32 %v387, %v336
  %v389 = vstv %s67
  %v390 = vmul.f32 %v389, %v351
  %v391 = vadd.f32 %v388, %v390
  %v392 = vstv %s68
  %v393 = vmul.f32 %v392, %v366
  %v394 = vadd.f32 %v391, %v393
  %v395 = vstv %s71
  %v396 = vadd.f32 %v394, %v395
  %v397 = vstv %s109
  %v398 = vmul.f32 %v397, %v336
  %v399 = vstv %s110
  %v400 = vmul.f32 %v399, %v351
  %v401 = vadd.f32 %v398, %v400
  %v402 = vstv %s111
  %v403 = vmul.f32 %v402, %v366
  %v404 = vadd.f32 %v401, %v403
  %v405 = vstv %s118
  %v406 = vadd.f32 %v404, %v405
  %v407 = vstv %s112
  %v408 = vmul.f32 %v407, %v336
  %v409 = vstv %s113
  %v410 = vmul.f32 %v409, %v351
  %v411 = vadd.f32 %v408, %v410
  %v412 = vstv %s114
  %v413 = vmul.f32 %v412, %v366
  %v414 = vadd.f32 %v411, %v413
  %v415 = vstv %s119
  %v416 = vadd.f32 %v414, %v415
  %v417 = vstv %s115
  %v418 = vmul.f32 %v417, %v336
  %v419 = vstv %s116
  %v420 = vmul.f32 %v419, %v351
  %v421 = vadd.f32 %v418, %v420
  %v422 = vstv %s117
  %v423 = vmul.f32 %v422, %v366
  %v424 = vadd.f32 %v421, %v423
  %v425 = vstv %s120
  %v426 = vadd.f32 %v424, %v425
  %v427 = vmax.f32 %v406, 0.0
  %v428 = vand.u32 2147483647, %v406
  %v429 = vsub.f32 0.0, %v428
  %v430 = vmul.f32 %v429, 1.442695
  %v431 = vpow.pop %v430
  %v432 = vadd.f32 %v431, 1.0
  %v433 = vlog2.pop %v432
  %v434 = vmul.f32 %v433, 0.6931472
  %v435 = vmul.f32 -0.5, %v431
  %v436 = vadd.f32 %v435, 1.0
  %v437 = vmul.f32 %v436, %v431
  %v438 = vand.u32 2147483647, %v431
  %vm439 = vcmp.lt.f32.partialorder %v438, 0.0004427343
  %v440 = vsel %vm439, %v437, %v434
  %v441 = vadd.f32 %v427, %v440
  %v442 = vmax.f32 %v416, 0.0
  %v443 = vand.u32 2147483647, %v416
  %v444 = vsub.f32 0.0, %v443
  %v445 = vmul.f32 %v444, 1.442695
  %v446 = vpow.pop %v445
  %v447 = vadd.f32 %v446, 1.0
  %v448 = vlog2.pop %v447
  %v449 = vmul.f32 %v448, 0.6931472
  %v450 = vmul.f32 -0.5, %v446
  %v451 = vadd.f32 %v450, 1.0
  %v452 = vmul.f32 %v451, %v446
  %v453 = vand.u32 2147483647, %v446
  %vm454 = vcmp.lt.f32.partialorder %v453, 0.0004427343
  %v455 = vsel %vm454, %v452, %v449
  %v456 = vadd.f32 %v442, %v455
  %v457 = vmax.f32 %v426, 0.0
  %v458 = vand.u32 2147483647, %v426
  %v459 = vsub.f32 0.0, %v458
  %v460 = vmul.f32 %v459, 1.442695
  %v461 = vpow.pop %v460
  %v462 = vadd.f32 %v461, 1.0
  %v463 = vlog2.pop %v462
  %v464 = vmul.f32 %v463, 0.6931472
  %v465 = vmul.f32 -0.5, %v461
  %v466 = vadd.f32 %v465, 1.0
  %v467 = vmul.f32 %v466, %v461
  %v468 = vand.u32 2147483647, %v461
  %vm469 = vcmp.lt.f32.partialorder %v468, 0.0004427343
  %v470 = vsel %vm469, %v467, %v464
  %v471 = vadd.f32 %v457, %v470
  %v472 = vmul.f32 %v270, %v441
  %v473 = vmul.f32 %v285, %v456
  %v474 = vmul.f32 %v300, %v471
  %v475 = vstv %s88
  %v476 = vmul.f32 %v475, %v472
  %v477 = vstv %s89
  %v478 = vmul.f32 %v477, %v473
  %v479 = vadd.f32 %v476, %v478
  %v480 = vstv %s90
  %v481 = vmul.f32 %v480, %v474
  %v482 = vadd.f32 %v479, %v481
  %v483 = vstv %s91
  %v484 = vmul.f32 %v483, %v472
  %v485 = vstv %s92
  %v486 = vmul.f32 %v485, %v473
  %v487 = vadd.f32 %v484, %v486
  %v488 = vstv %s93
  %v489 = vmul.f32 %v488, %v474
  %v490 = vadd.f32 %v487, %v489
  %v491 = vstv %s94
  %v492 = vmul.f32 %v491, %v472
  %v493 = vstv %s95
  %v494 = vmul.f32 %v493, %v473
  %v495 = vadd.f32 %v492, %v494
  %v496 = vstv %s96
  %v497 = vmul.f32 %v496, %v474
  %v498 = vadd.f32 %v495, %v497
  %v499 = vstv %s171
  %v500 = vmul.f32 %v499, %v336
  %v501 = vstv %s172
  %v502 = vmul.f32 %v501, %v351
  %v503 = vadd.f32 %v500, %v502
  %v504 = vstv %s173
  %v505 = vmul.f32 %v504, %v366
  %v506 = vadd.f32 %v503, %v505
  %v507 = vstv %s177
  %v508 = vadd.f32 %v506, %v507
  %v509 = vstv %s174
  %v510 = vmul.f32 %v509, %v336
  %v511 = vstv %s175
  %v512 = vmul.f32 %v511, %v351
  %v513 = vadd.f32 %v510, %v512
  %v514 = vstv %s176
  %v515 = vmul.f32 %v514, %v366
  %v516 = vadd.f32 %v513, %v515
  %v517 = vstv %s178
  %v518 = vadd.f32 %v516, %v517
  %v519 = vmul.f32 %v198, %v508
  %v520 = vmul.f32 %v200, %v518
  %v521 = vstv %s151
  %v522 = vmul.f32 %v521, %v519
  %v523 = vstv %s152
  %v524 = vmul.f32 %v523, %v520
  %v525 = vadd.f32 %v522, %v524
  %v526 = vstv %s153
  %v527 = vmul.f32 %v526, %v519
  %v528 = vstv %s154
  %v529 = vmul.f32 %v528, %v520
  %v530 = vadd.f32 %v527, %v529
  %v531 = vstv %s155
  %v532 = vmul.f32 %v531, %v519
  %v533 = vstv %s156
  %v534 = vmul.f32 %v533, %v520
  %v535 = vadd.f32 %v532, %v534
  %v536 = vadd.f32 %v376, %v482
  %v537 = vadd.f32 %v386, %v490
  %v538 = vadd.f32 %v396, %v498
  %v539 = vadd.f32 %v536, %v525
  %v540 = vadd.f32 %v537, %v530
  %v541 = vadd.f32 %v538, %v535
  %v542 = vmax.f32 %v539, 0.0
  %v543 = vand.u32 2147483647, %v539
  %v544 = vsub.f32 0.0, %v543
  %v545 = vmul.f32 %v544, 1.442695
  %v546 = vpow.pop %v545
  %v547 = vadd.f32 %v546, 1.0
  %v548 = vlog2.pop %v547
  %v549 = vmul.f32 %v548, 0.6931472
  %v550 = vmul.f32 -0.5, %v546
  %v551 = vadd.f32 %v550, 1.0
  %v552 = vmul.f32 %v551, %v546
  %v553 = vand.u32 2147483647, %v546
  %vm554 = vcmp.lt.f32.partialorder %v553, 0.0004427343
  %v555 = vsel %vm554, %v552, %v549
  %v556 = vadd.f32 %v542, %v555
  %v557 = vmax.f32 %v540, 0.0
  %v558 = vand.u32 2147483647, %v540
  %v559 = vsub.f32 0.0, %v558
  %v560 = vmul.f32 %v559, 1.442695
  %v561 = vpow.pop %v560
  %v562 = vadd.f32 %v561, 1.0
  %v563 = vlog2.pop %v562
  %v564 = vmul.f32 %v563, 0.6931472
  %v565 = vmul.f32 -0.5, %v561
  %v566 = vadd.f32 %v565, 1.0
  %v567 = vmul.f32 %v566, %v561
  %v568 = vand.u32 2147483647, %v561
  %vm569 = vcmp.lt.f32.partialorder %v568, 0.0004427343
  %v570 = vsel %vm569, %v567, %v564
  %v571 = vadd.f32 %v557, %v570
  %v572 = vmax.f32 %v541, 0.0
  %v573 = vand.u32 2147483647, %v541
  %v574 = vsub.f32 0.0, %v573
  %v575 = vmul.f32 %v574, 1.442695
  %v576 = vpow.pop %v575
  %v577 = vadd.f32 %v576, 1.0
  %v578 = vlog2.pop %v577
  %v579 = vmul.f32 %v578, 0.6931472
  %v580 = vmul.f32 -0.5, %v576
  %v581 = vadd.f32 %v580, 1.0
  %v582 = vmul.f32 %v581, %v576
  %v583 = vand.u32 2147483647, %v576
  %vm584 = vcmp.lt.f32.partialorder %v583, 0.0004427343
  %v585 = vsel %vm584, %v582, %v579
  %v586 = vadd.f32 %v572, %v585
  %v587 = vstv %s27
  %v588 = vmul.f32 %v587, %v336
  %v589 = vstv %s28
  %v590 = vmul.f32 %v589, %v351
  %v591 = vadd.f32 %v588, %v590
  %v592 = vstv %s29
  %v593 = vmul.f32 %v592, %v366
  %v594 = vadd.f32 %v591, %v593
  %v595 = vstv %s36
  %v596 = vadd.f32 %v594, %v595
  %v597 = vstv %s30
  %v598 = vmul.f32 %v597, %v336
  %v599 = vstv %s31
  %v600 = vmul.f32 %v599, %v351
  %v601 = vadd.f32 %v598, %v600
  %v602 = vstv %s32
  %v603 = vmul.f32 %v602, %v366
  %v604 = vadd.f32 %v601, %v603
  %v605 = vstv %s37
  %v606 = vadd.f32 %v604, %v605
  %v607 = vstv %s33
  %v608 = vmul.f32 %v607, %v336
  %v609 = vstv %s34
  %v610 = vmul.f32 %v609, %v351
  %v611 = vadd.f32 %v608, %v610
  %v612 = vstv %s35
  %v613 = vmul.f32 %v612, %v366
  %v614 = vadd.f32 %v611, %v613
  %v615 = vstv %s38
  %v616 = vadd.f32 %v614, %v615
  %v617 = vmax.f32 %v596, 0.0
  %v618 = vand.u32 2147483647, %v596
  %v619 = vsub.f32 0.0, %v618
  %v620 = vmul.f32 %v619, 1.442695
  %v621 = vpow.pop %v620
  %v622 = vadd.f32 %v621, 1.0
  %v623 = vlog2.pop %v622
  %v624 = vmul.f32 %v623, 0.6931472
  %v625 = vmul.f32 -0.5, %v621
  %v626 = vadd.f32 %v625, 1.0
  %v627 = vmul.f32 %v626, %v621
  %v628 = vand.u32 2147483647, %v621
  %vm629 = vcmp.lt.f32.partialorder %v628, 0.0004427343
  %v630 = vsel %vm629, %v627, %v624
  %v631 = vadd.f32 %v617, %v630
  %v632 = vmax.f32 %v606, 0.0
  %v633 = vand.u32 2147483647, %v606
  %v634 = vsub.f32 0.0, %v633
  %v635 = vmul.f32 %v634, 1.442695
  %v636 = vpow.pop %v635
  %v637 = vadd.f32 %v636, 1.0
  %v638 = vlog2.pop %v637
  %v639 = vmul.f32 %v638, 0.6931472
  %v640 = vmul.f32 -0.5, %v636
  %v641 = vadd.f32 %v640, 1.0
  %v642 = vmul.f32 %v641, %v636
  %v643 = vand.u32 2147483647, %v636
  %vm644 = vcmp.lt.f32.partialorder %v643, 0.0004427343
  %v645 = vsel %vm644, %v642, %v639
  %v646 = vadd.f32 %v632, %v645
  %v647 = vmax.f32 %v616, 0.0
  %v648 = vand.u32 2147483647, %v616
  %v649 = vsub.f32 0.0, %v648
  %v650 = vmul.f32 %v649, 1.442695
  %v651 = vpow.pop %v650
  %v652 = vadd.f32 %v651, 1.0
  %v653 = vlog2.pop %v652
  %v654 = vmul.f32 %v653, 0.6931472
  %v655 = vmul.f32 -0.5, %v651
  %v656 = vadd.f32 %v655, 1.0
  %v657 = vmul.f32 %v656, %v651
  %v658 = vand.u32 2147483647, %v651
  %vm659 = vcmp.lt.f32.partialorder %v658, 0.0004427343
  %v660 = vsel %vm659, %v657, %v654
  %v661 = vadd.f32 %v647, %v660
  %v662 = vstv %s72
  %v663 = vmul.f32 %v662, %v631
  %v664 = vstv %s73
  %v665 = vmul.f32 %v664, %v646
  %v666 = vadd.f32 %v663, %v665
  %v667 = vstv %s74
  %v668 = vmul.f32 %v667, %v661
  %v669 = vadd.f32 %v666, %v668
  %v670 = vstv %s81
  %v671 = vadd.f32 %v669, %v670
  %v672 = vstv %s75
  %v673 = vmul.f32 %v672, %v631
  %v674 = vstv %s76
  %v675 = vmul.f32 %v674, %v646
  %v676 = vadd.f32 %v673, %v675
  %v677 = vstv %s77
  %v678 = vmul.f32 %v677, %v661
  %v679 = vadd.f32 %v676, %v678
  %v680 = vstv %s82
  %v681 = vadd.f32 %v679, %v680
  %v682 = vstv %s78
  %v683 = vmul.f32 %v682, %v631
  %v684 = vstv %s79
  %v685 = vmul.f32 %v684, %v646
  %v686 = vadd.f32 %v683, %v685
  %v687 = vstv %s80
  %v688 = vmul.f32 %v687, %v661
  %v689 = vadd.f32 %v686, %v688
  %v690 = vstv %s83
  %v691 = vadd.f32 %v689, %v690
  %v692 = vstv %s121
  %v693 = vmul.f32 %v692, %v631
  %v694 = vstv %s122
  %v695 = vmul.f32 %v694, %v646
  %v696 = vadd.f32 %v693, %v695
  %v697 = vstv %s123
  %v698 = vmul.f32 %v697, %v661
  %v699 = vadd.f32 %v696, %v698
  %v700 = vstv %s130
  %v701 = vadd.f32 %v699, %v700
  %v702 = vstv %s124
  %v703 = vmul.f32 %v702, %v631
  %v704 = vstv %s125
  %v705 = vmul.f32 %v704, %v646
  %v706 = vadd.f32 %v703, %v705
  %v707 = vstv %s126
  %v708 = vmul.f32 %v707, %v661
  %v709 = vadd.f32 %v706, %v708
  %v710 = vstv %s131
  %v711 = vadd.f32 %v709, %v710
  %v712 = vstv %s127
  %v713 = vmul.f32 %v712, %v631
  %v714 = vstv %s128
  %v715 = vmul.f32 %v714, %v646
  %v716 = vadd.f32 %v713, %v715
  %v717 = vstv %s129
  %v718 = vmul.f32 %v717, %v661
  %v719 = vadd.f32 %v716, %v718
  %v720 = vstv %s132
  %v721 = vadd.f32 %v719, %v720
  %v722 = vmax.f32 %v701, 0.0
  %v723 = vand.u32 2147483647, %v701
  %v724 = vsub.f32 0.0, %v723
  %v725 = vmul.f32 %v724, 1.442695
  %v726 = vpow.pop %v725
  %v727 = vadd.f32 %v726, 1.0
  %v728 = vlog2.pop %v727
  %v729 = vmul.f32 %v728, 0.6931472
  %v730 = vmul.f32 -0.5, %v726
  %v731 = vadd.f32 %v730, 1.0
  %v732 = vmul.f32 %v731, %v726
  %v733 = vand.u32 2147483647, %v726
  %vm734 = vcmp.lt.f32.partialorder %v733, 0.0004427343
  %v735 = vsel %vm734, %v732, %v729
  %v736 = vadd.f32 %v722, %v735
  %v737 = vmax.f32 %v711, 0.0
  %v738 = vand.u32 2147483647, %v711
  %v739 = vsub.f32 0.0, %v738
  %v740 = vmul.f32 %v739, 1.442695
  %v741 = vpow.pop %v740
  %v742 = vadd.f32 %v741, 1.0
  %v743 = vlog2.pop %v742
  %v744 = vmul.f32 %v743, 0.6931472
  %v745 = vmul.f32 -0.5, %v741
  %v746 = vadd.f32 %v745, 1.0
  %v747 = vmul.f32 %v746, %v741
  %v748 = vand.u32 2147483647, %v741
  %vm749 = vcmp.lt.f32.partialorder %v748, 0.0004427343
  %v750 = vsel %vm749, %v747, %v744
  %v751 = vadd.f32 %v737, %v750
  %v752 = vmax.f32 %v721, 0.0
  %v753 = vand.u32 2147483647, %v721
  %v754 = vsub.f32 0.0, %v753
  %v755 = vmul.f32 %v754, 1.442695
  %v756 = vpow.pop %v755
  %v757 = vadd.f32 %v756, 1.0
  %v758 = vlog2.pop %v757
  %v759 = vmul.f32 %v758, 0.6931472
  %v760 = vmul.f32 -0.5, %v756
  %v761 = vadd.f32 %v760, 1.0
  %v762 = vmul.f32 %v761, %v756
  %v763 = vand.u32 2147483647, %v756
  %vm764 = vcmp.lt.f32.partialorder %v763, 0.0004427343
  %v765 = vsel %vm764, %v762, %v759
  %v766 = vadd.f32 %v752, %v765
  %v767 = vmul.f32 %v556, %v736
  %v768 = vmul.f32 %v571, %v751
  %v769 = vmul.f32 %v586, %v766
  %v770 = vstv %s97
  %v771 = vmul.f32 %v770, %v767
  %v772 = vstv %s98
  %v773 = vmul.f32 %v772, %v768
  %v774 = vadd.f32 %v771, %v773
  %v775 = vstv %s99
  %v776 = vmul.f32 %v775, %v769
  %v777 = vadd.f32 %v774, %v776
  %v778 = vstv %s100
  %v779 = vmul.f32 %v778, %v767
  %v780 = vstv %s101
  %v781 = vmul.f32 %v780, %v768
  %v782 = vadd.f32 %v779, %v781
  %v783 = vstv %s102
  %v784 = vmul.f32 %v783, %v769
  %v785 = vadd.f32 %v782, %v784
  %v786 = vstv %s103
  %v787 = vmul.f32 %v786, %v767
  %v788 = vstv %s104
  %v789 = vmul.f32 %v788, %v768
  %v790 = vadd.f32 %v787, %v789
  %v791 = vstv %s105
  %v792 = vmul.f32 %v791, %v769
  %v793 = vadd.f32 %v790, %v792
  %v794 = vstv %s179
  %v795 = vmul.f32 %v794, %v631
  %v796 = vstv %s180
  %v797 = vmul.f32 %v796, %v646
  %v798 = vadd.f32 %v795, %v797
  %v799 = vstv %s181
  %v800 = vmul.f32 %v799, %v661
  %v801 = vadd.f32 %v798, %v800
  %v802 = vstv %s185
  %v803 = vadd.f32 %v801, %v802
  %v804 = vstv %s182
  %v805 = vmul.f32 %v804, %v631
  %v806 = vstv %s183
  %v807 = vmul.f32 %v806, %v646
  %v808 = vadd.f32 %v805, %v807
  %v809 = vstv %s184
  %v810 = vmul.f32 %v809, %v661
  %v811 = vadd.f32 %v808, %v810
  %v812 = vstv %s186
  %v813 = vadd.f32 %v811, %v812
  %v814 = vmul.f32 %v198, %v803
  %v815 = vmul.f32 %v200, %v813
  %v816 = vstv %s157
  %v817 = vmul.f32 %v816, %v814
  %v818 = vstv %s158
  %v819 = vmul.f32 %v818, %v815
  %v820 = vadd.f32 %v817, %v819
  %v821 = vstv %s159
  %v822 = vmul.f32 %v821, %v814
  %v823 = vstv %s160
  %v824 = vmul.f32 %v823, %v815
  %v825 = vadd.f32 %v822, %v824
  %v826 = vstv %s161
  %v827 = vmul.f32 %v826, %v814
  %v828 = vstv %s162
  %v829 = vmul.f32 %v828, %v815
  %v830 = vadd.f32 %v827, %v829
  %v831 = vadd.f32 %v671, %v777
  %v832 = vadd.f32 %v681, %v785
  %v833 = vadd.f32 %v691, %v793
  %v834 = vadd.f32 %v831, %v820
  %v835 = vadd.f32 %v832, %v825
  %v836 = vadd.f32 %v833, %v830
  %v837 = vmax.f32 %v834, 0.0
  %v838 = vand.u32 2147483647, %v834
  %v839 = vsub.f32 0.0, %v838
  %v840 = vmul.f32 %v839, 1.442695
  %v841 = vpow.pop %v840
  %v842 = vadd.f32 %v841, 1.0
  %v843 = vlog2.pop %v842
  %v844 = vmul.f32 %v843, 0.6931472
  %v845 = vmul.f32 -0.5, %v841
  %v846 = vadd.f32 %v845, 1.0
  %v847 = vmul.f32 %v846, %v841
  %v848 = vand.u32 2147483647, %v841
  %vm849 = vcmp.lt.f32.partialorder %v848, 0.0004427343
  %v850 = vsel %vm849, %v847, %v844
  %v851 = vadd.f32 %v837, %v850
  %v852 = vmax.f32 %v835, 0.0
  %v853 = vand.u32 2147483647, %v835
  %v854 = vsub.f32 0.0, %v853
  %v855 = vmul.f32 %v854, 1.442695
  %v856 = vpow.pop %v855
  %v857 = vadd.f32 %v856, 1.0
  %v858 = vlog2.pop %v857
  %v859 = vmul.f32 %v858, 0.6931472
  %v860 = vmul.f32 -0.5, %v856
  %v861 = vadd.f32 %v860, 1.0
  %v862 = vmul.f32 %v861, %v856
  %v863 = vand.u32 2147483647, %v856
  %vm864 = vcmp.lt.f32.partialorder %v863, 0.0004427343
  %v865 = vsel %vm864, %v862, %v859
  %v866 = vadd.f32 %v852, %v865
  %v867 = vmax.f32 %v836, 0.0
  %v868 = vand.u32 2147483647, %v836
  %v869 = vsub.f32 0.0, %v868
  %v870 = vmul.f32 %v869, 1.442695
  %v871 = vpow.pop %v870
  %v872 = vadd.f32 %v871, 1.0
  %v873 = vlog2.pop %v872
  %v874 = vmul.f32 %v873, 0.6931472
  %v875 = vmul.f32 -0.5, %v871
  %v876 = vadd.f32 %v875, 1.0
  %v877 = vmul.f32 %v876, %v871
  %v878 = vand.u32 2147483647, %v871
  %vm879 = vcmp.lt.f32.partialorder %v878, 0.0004427343
  %v880 = vsel %vm879, %v877, %v874
  %v881 = vadd.f32 %v867, %v880
  %v882 = vstv %s39
  %v883 = vmul.f32 %v882, %v631
  %v884 = vstv %s40
  %v885 = vmul.f32 %v884, %v646
  %v886 = vadd.f32 %v883, %v885
  %v887 = vstv %s41
  %v888 = vmul.f32 %v887, %v661
  %v889 = vadd.f32 %v886, %v888
  %v890 = vstv %s48
  %v891 = vadd.f32 %v889, %v890
  %v892 = vstv %s42
  %v893 = vmul.f32 %v892, %v631
  %v894 = vstv %s43
  %v895 = vmul.f32 %v894, %v646
  %v896 = vadd.f32 %v893, %v895
  %v897 = vstv %s44
  %v898 = vmul.f32 %v897, %v661
  %v899 = vadd.f32 %v896, %v898
  %v900 = vstv %s49
  %v901 = vadd.f32 %v899, %v900
  %v902 = vstv %s45
  %v903 = vmul.f32 %v902, %v631
  %v904 = vstv %s46
  %v905 = vmul.f32 %v904, %v646
  %v906 = vadd.f32 %v903, %v905
  %v907 = vstv %s47
  %v908 = vmul.f32 %v907, %v661
  %v909 = vadd.f32 %v906, %v908
  %v910 = vstv %s50
  %v911 = vadd.f32 %v909, %v910
  %v912 = vmax.f32 %v891, 0.0
  %v913 = vand.u32 2147483647, %v891
  %v914 = vsub.f32 0.0, %v913
  %v915 = vmul.f32 %v914, 1.442695
  %v916 = vpow.pop %v915
  %v917 = vadd.f32 %v916, 1.0
  %v918 = vlog2.pop %v917
  %v919 = vmul.f32 %v918, 0.6931472
  %v920 = vmul.f32 -0.5, %v916
  %v921 = vadd.f32 %v920, 1.0
  %v922 = vmul.f32 %v921, %v916
  %v923 = vand.u32 2147483647, %v916
  %vm924 = vcmp.lt.f32.partialorder %v923, 0.0004427343
  %v925 = vsel %vm924, %v922, %v919
  %v926 = vadd.f32 %v912, %v925
  %v927 = vmax.f32 %v901, 0.0
  %v928 = vand.u32 2147483647, %v901
  %v929 = vsub.f32 0.0, %v928
  %v930 = vmul.f32 %v929, 1.442695
  %v931 = vpow.pop %v930
  %v932 = vadd.f32 %v931, 1.0
  %v933 = vlog2.pop %v932
  %v934 = vmul.f32 %v933, 0.6931472
  %v935 = vmul.f32 -0.5, %v931
  %v936 = vadd.f32 %v935, 1.0
  %v937 = vmul.f32 %v936, %v931
  %v938 = vand.u32 2147483647, %v931
  %vm939 = vcmp.lt.f32.partialorder %v938, 0.0004427343
  %v940 = vsel %vm939, %v937, %v934
  %v941 = vadd.f32 %v927, %v940
  %v942 = vmax.f32 %v911, 0.0
  %v943 = vand.u32 2147483647, %v911
  %v944 = vsub.f32 0.0, %v943
  %v945 = vmul.f32 %v944, 1.442695
  %v946 = vpow.pop %v945
  %v947 = vadd.f32 %v946, 1.0
  %v948 = vlog2.pop %v947
  %v949 = vmul.f32 %v948, 0.6931472
  %v950 = vmul.f32 -0.5, %v946
  %v951 = vadd.f32 %v950, 1.0
  %v952 = vmul.f32 %v951, %v946
  %v953 = vand.u32 2147483647, %v946
  %vm954 = vcmp.lt.f32.partialorder %v953, 0.0004427343
  %v955 = vsel %vm954, %v952, %v949
  %v956 = vadd.f32 %v942, %v955
  %v957 = vstv %s84
  %v958 = vmul.f32 %v957, %v926
  %v959 = vstv %s85
  %v960 = vmul.f32 %v959, %v941
  %v961 = vadd.f32 %v958, %v960
  %v962 = vstv %s86
  %v963 = vmul.f32 %v962, %v956
  %v964 = vadd.f32 %v961, %v963
  %v965 = vstv %s87
  %v966 = vadd.f32 %v964, %v965
  %v967 = vstv %s133
  %v968 = vmul.f32 %v967, %v926
  %v969 = vstv %s134
  %v970 = vmul.f32 %v969, %v941
  %v971 = vadd.f32 %v968, %v970
  %v972 = vstv %s135
  %v973 = vmul.f32 %v972, %v956
  %v974 = vadd.f32 %v971, %v973
  %v975 = vstv %s142
  %v976 = vadd.f32 %v974, %v975
  %v977 = vstv %s136
  %v978 = vmul.f32 %v977, %v926
  %v979 = vstv %s137
  %v980 = vmul.f32 %v979, %v941
  %v981 = vadd.f32 %v978, %v980
  %v982 = vstv %s138
  %v983 = vmul.f32 %v982, %v956
  %v984 = vadd.f32 %v981, %v983
  %v985 = vstv %s143
  %v986 = vadd.f32 %v984, %v985
  %v987 = vstv %s139
  %v988 = vmul.f32 %v987, %v926
  %v989 = vstv %s140
  %v990 = vmul.f32 %v989, %v941
  %v991 = vadd.f32 %v988, %v990
  %v992 = vstv %s141
  %v993 = vmul.f32 %v992, %v956
  %v994 = vadd.f32 %v991, %v993
  %v995 = vstv %s144
  %v996 = vadd.f32 %v994, %v995
  %v997 = vmax.f32 %v976, 0.0
  %v998 = vand.u32 2147483647, %v976
  %v999 = vsub.f32 0.0, %v998
  %v1000 = vmul.f32 %v999, 1.442695
  %v1001 = vpow.pop %v1000
  %v1002 = vadd.f32 %v1001, 1.0
  %v1003 = vlog2.pop %v1002
  %v1004 = vmul.f32 %v1003, 0.6931472
  %v1005 = vmul.f32 -0.5, %v1001
  %v1006 = vadd.f32 %v1005, 1.0
  %v1007 = vmul.f32 %v1006, %v1001
  %v1008 = vand.u32 2147483647, %v1001
  %vm1009 = vcmp.lt.f32.partialorder %v1008, 0.0004427343
  %v1010 = vsel %vm1009, %v1007, %v1004
  %v1011 = vadd.f32 %v997, %v1010
  %v1012 = vmax.f32 %v986, 0.0
  %v1013 = vand.u32 2147483647, %v986
  %v1014 = vsub.f32 0.0, %v1013
  %v1015 = vmul.f32 %v1014, 1.442695
  %v1016 = vpow.pop %v1015
  %v1017 = vadd.f32 %v1016, 1.0
  %v1018 = vlog2.pop %v1017
  %v1019 = vmul.f32 %v1018, 0.6931472
  %v1020 = vmul.f32 -0.5, %v1016
  %v1021 = vadd.f32 %v1020, 1.0
  %v1022 = vmul.f32 %v1021, %v1016
  %v1023 = vand.u32 2147483647, %v1016
  %vm1024 = vcmp.lt.f32.partialorder %v1023, 0.0004427343
  %v1025 = vsel %vm1024, %v1022, %v1019
  %v1026 = vadd.f32 %v1012, %v1025
  %v1027 = vmax.f32 %v996, 0.0
  %v1028 = vand.u32 2147483647, %v996
  %v1029 = vsub.f32 0.0, %v1028
  %v1030 = vmul.f32 %v1029, 1.442695
  %v1031 = vpow.pop %v1030
  %v1032 = vadd.f32 %v1031, 1.0
  %v1033 = vlog2.pop %v1032
  %v1034 = vmul.f32 %v1033, 0.6931472
  %v1035 = vmul.f32 -0.5, %v1031
  %v1036 = vadd.f32 %v1035, 1.0
  %v1037 = vmul.f32 %v1036, %v1031
  %v1038 = vand.u32 2147483647, %v1031
  %vm1039 = vcmp.lt.f32.partialorder %v1038, 0.0004427343
  %v1040 = vsel %vm1039, %v1037, %v1034
  %v1041 = vadd.f32 %v1027, %v1040
  %v1042 = vmul.f32 %v851, %v1011
  %v1043 = vmul.f32 %v866, %v1026
  %v1044 = vmul.f32 %v881, %v1041
  %v1045 = vstv %s106
  %v1046 = vmul.f32 %v1045, %v1042
  %v1047 = vstv %s107
  %v1048 = vmul.f32 %v1047, %v1043
  %v1049 = vadd.f32 %v1046, %v1048
  %v1050 = vstv %s108
  %v1051 = vmul.f32 %v1050, %v1044
  %v1052 = vadd.f32 %v1049, %v1051
  %v1053 = vstv %s187
  %v1054 = vmul.f32 %v1053, %v926
  %v1055 = vstv %s188
  %v1056 = vmul.f32 %v1055, %v941
  %v1057 = vadd.f32 %v1054, %v1056
  %v1058 = vstv %s189
  %v1059 = vmul.f32 %v1058, %v956
  %v1060 = vadd.f32 %v1057, %v1059
  %v1061 = vstv %s193
  %v1062 = vadd.f32 %v1060, %v1061
  %v1063 = vstv %s190
  %v1064 = vmul.f32 %v1063, %v926
  %v1065 = vstv %s191
  %v1066 = vmul.f32 %v1065, %v941
  %v1067 = vadd.f32 %v1064, %v1066
  %v1068 = vstv %s192
  %v1069 = vmul.f32 %v1068, %v956
  %v1070 = vadd.f32 %v1067, %v1069
  %v1071 = vstv %s194
  %v1072 = vadd.f32 %v1070, %v1071
  %v1073 = vmul.f32 %v198, %v1062
  %v1074 = vmul.f32 %v200, %v1072
  %v1075 = vstv %s163
  %v1076 = vmul.f32 %v1075, %v1073
  %v1077 = vstv %s164
  %v1078 = vmul.f32 %v1077, %v1074
  %v1079 = vadd.f32 %v1076, %v1078
  %v1080 = vadd.f32 %v966, %v1052
  %v1081 = vadd.f32 %v1080, %v1079
  %v1082 = vmax.f32 %v1081, 0.0
  %v1083 = vand.u32 2147483647, %v1081
  %v1084 = vsub.f32 0.0, %v1083
  %v1085 = vmul.f32 %v1084, 1.442695
  %v1086 = vpow.pop %v1085
  %v1087 = vadd.f32 %v1086, 1.0
  %v1088 = vlog2.pop %v1087
  %v1089 = vmul.f32 %v1088, 0.6931472
  %v1090 = vmul.f32 -0.5, %v1086
  %v1091 = vadd.f32 %v1090, 1.0
  %v1092 = vmul.f32 %v1091, %v1086
  %v1093 = vand.u32 2147483647, %v1086
  %vm1094 = vcmp.lt.f32.partialorder %v1093, 0.0004427343
  %v1095 = vsel %vm1094, %v1092, %v1089
  %v1096 = vadd.f32 %v1082, %v1095
  %1097 = vst [vmem:[%s3] sm:$0xff] %v1096
  // Predicated region
  $region10: #{dissipation_forward.1} parent=0 // pred_check
    _
  $region11: #{dissipation_forward.1} parent=0 // pred_check_branch
    %1099 = sbr.rel (0) target = $region13
  $region12: #{dissipation_forward.1} parent=0 // pred_region
    _
  $region13: #{dissipation_forward.1} parent=0 // pred_fallthru
    _
  // Predicated region
  $region14: #{dissipation_forward.1} parent=0 // pred_check
    _
  $region15: #{dissipation_forward.1} parent=0 // pred_check_branch
    %1101 = sbr.rel (0) target = $region17
  $region16: #{dissipation_forward.1} parent=0 // pred_region
    _
  $region17: #{dissipation_forward.1} parent=0 // pred_fallthru
    _

</llo_original>
